<compile_context>
chip_gen: v7x
topology: tpu7x:2x2x1
jax: 0.10.0
libtpu: 0.0.40
codegen_flags: <defaults>
</compile_context>

<pallas_src>
import functools
import math

import jax
import jax.numpy as jnp
from jax.experimental import pallas as pl
from jax.experimental.pallas import tpu as pltpu


def _round_up(x, m):
    return (x + m - 1) // m * m


# ------------------------------ fused kernel ------------------------------- #

def _fused_encoder_kernel(num_layers,
                          h0_ref,    # VMEM (n_pad, f_pad) f32   = (emb_table @ W0)[idx]
                          a_ref,     # VMEM (n_pad, n_pad) bf16  binary adjacency A[dst, src]
                          dsrc_ref,  # VMEM (n_pad, 1) f32       out-degree^-1/2 (src)
                          ddst_ref,  # VMEM (n_pad, 1) f32       in-degree^-1/2  (dst)
                          w_ref,     # VMEM (max(L-1,1), f_pad, f_pad) bf16
                          b_ref,     # VMEM (L, f_pad) f32
                          o_ref):    # VMEM (n_pad, f_pad) f32
    a = a_ref[...]            # bf16 binary adjacency, resident for all layers
    d_src = dsrc_ref[...]     # (n_pad, 1) f32
    d_dst = ddst_ref[...]     # (n_pad, 1) f32

    h = h0_ref[...]           # f32; for layer 0 this is already X @ W0
    for l in range(num_layers):
        if l > 0:
            # XW for this layer (layer 0's W is folded into H0 on the host side).
            h = jnp.dot(h.astype(jnp.bfloat16), w_ref[l - 1],
                        preferred_element_type=jnp.float32)
        # GraphConv(norm='both'): D_dst^-1/2 A D_src^-1/2 (X W) + b, then ReLU.
        xw = (h * d_src).astype(jnp.bfloat16)
        y = jnp.dot(a, xw, preferred_element_type=jnp.float32)
        y = y * d_dst + b_ref[pl.ds(l, 1), :]
        h = jnp.maximum(y, 0.0)

    o_ref[...] = h.astype(o_ref.dtype)


# ------------------------------ JAX wrapper -------------------------------- #

def emb_gcn_encoder(batch, adj, emb_table, gcn_params):
    """Forward pass equivalent to EmbGCNEncoder.forward(batch, graph)."""
    num_layers = len(gcn_params)
    assert num_layers >= 1
    n = int(batch.shape[0])
    vocab, _ = emb_table.shape
    out_dim = int(gcn_params[0][0].shape[1])

    n_pad = _round_up(n, 128)
    # Multiples of 128 fully use v5e's 128x128 MXU; for out_dim <= 128 the partial
    # fill of the 256-wide v6e/v7x MXU is inherent, so padding further only wastes FLOPs.
    f_pad = _round_up(out_dim, 128)

    # --- fold nn.Embedding with the first GraphConv weight; gather in XLA so the
    #     kernel receives one contiguous, lane-dense H0 block (no per-row DMAs) ---
    w0, _ = gcn_params[0]
    idx = jnp.clip(batch.astype(jnp.int32), 0, vocab - 1)   # guard OOB ids
    h0 = jnp.pad((emb_table @ w0)[idx],
                 ((0, n_pad - n), (0, f_pad - out_dim))).astype(jnp.float32)

    # --- binary adjacency (exact in bf16) + degree scalings as f32 vectors ---
    adj_p = jnp.pad(adj.astype(jnp.float32), ((0, n_pad - n), (0, n_pad - n)))
    in_deg = jnp.maximum(adj_p.sum(axis=1), 1.0)    # in-degree of dst  (row sum)
    out_deg = jnp.maximum(adj_p.sum(axis=0), 1.0)   # out-degree of src (col sum)
    d_dst = (in_deg ** -0.5).reshape(n_pad, 1).astype(jnp.float32)
    d_src = (out_deg ** -0.5).reshape(n_pad, 1).astype(jnp.float32)
    a_bf16 = adj_p.astype(jnp.bfloat16)

    # --- stack remaining layer weights / all biases, feature dims padded ---
    ws = [jnp.pad(w, ((0, f_pad - w.shape[0]), (0, f_pad - w.shape[1])))
          for (w, _) in gcn_params[1:]]
    w_stack = (jnp.stack(ws) if ws
               else jnp.zeros((1, f_pad, f_pad), jnp.float32)).astype(jnp.bfloat16)
    b_stack = jnp.stack([jnp.pad(b, (0, f_pad - b.shape[0]))
                         for (_, b) in gcn_params]).astype(jnp.float32)

    kernel = functools.partial(_fused_encoder_kernel, num_layers)

    flops = (num_layers * 2 * n_pad * n_pad * f_pad
             + (num_layers - 1) * 2 * n_pad * f_pad * f_pad)
    bytes_accessed = (a_bf16.size * 2 + h0.size * 4 + w_stack.size * 2
                      + b_stack.size * 4 + 2 * n_pad * 4 + n_pad * f_pad * 4)

    # Single-buffered (Buffered(1)) residency + compiler-materialized f32/bf16
    # temporaries (h / xw / y ~ 3 * n_pad * f_pad * 4B), with headroom below the
    # queried physical VMEM (128 MiB on v5e/v6e, 64 MiB on v7x).
    vmem_need = (a_bf16.size * 2 + h0.size * 4 + w_stack.size * 2 + b_stack.size * 4
                 + 2 * n_pad * 4                      # degree vectors
                 + n_pad * f_pad * 4                  # output buffer
                 + 3 * n_pad * f_pad * 4)             # in-kernel temporaries
    try:
        phys_vmem = int(pltpu.get_tpu_info().vmem_capacity_bytes)
    except Exception:
        phys_vmem = 64 * 2**20                        # conservative (v7x-sized) fallback
    vmem_limit = int(min(max(int(vmem_need * 1.25), 32 * 2**20), phys_vmem * 7 // 8))

    def build(pipeline_mode):
        kw = {} if pipeline_mode is None else {"pipeline_mode": pipeline_mode}
        return pl.pallas_call(
            kernel,
            out_shape=jax.ShapeDtypeStruct((n_pad, f_pad), jnp.float32),
            grid_spec=pltpu.PrefetchScalarGridSpec(
                num_scalar_prefetch=0,
                grid=(1,),
                in_specs=[
                    pl.BlockSpec((n_pad, f_pad), lambda i: (0, 0), **kw),    # H0
                    pl.BlockSpec((n_pad, n_pad), lambda i: (0, 0), **kw),    # A (bf16)
                    pl.BlockSpec((n_pad, 1), lambda i: (0, 0), **kw),        # D_src^-1/2
                    pl.BlockSpec((n_pad, 1), lambda i: (0, 0), **kw),        # D_dst^-1/2
                    pl.BlockSpec(w_stack.shape, lambda i: (0, 0, 0), **kw),  # W[1:]
                    pl.BlockSpec(b_stack.shape, lambda i: (0, 0), **kw),     # biases
                ],
                out_specs=pl.BlockSpec((n_pad, f_pad), lambda i: (0, 0), **kw),
            ),
            compiler_params=pltpu.CompilerParams(
                dimension_semantics=("arbitrary",),
                vmem_limit_bytes=vmem_limit,
            ),
            cost_estimate=pl.CostEstimate(flops=flops, transcendentals=0,
                                          bytes_accessed=bytes_accessed),
        )

    # grid=(1,) -> default double-buffering of constant-index operands wastes VMEM;
    # request single buffering, but fall back gracefully if this build rejects it.
    args = (h0, a_bf16, d_src, d_dst, w_stack, b_stack)
    try:
        out_pad = build(pl.Buffered(1))(*args)
    except Exception:
        out_pad = build(None)(*args)

    return out_pad[:n, :out_dim]


# ------------------------------ params & ref -------------------------------- #

def init_params(key, in_size, hidden_dim, out_dim, num_layers):
    """Deterministic synthetic parameters (shapes match the PyTorch module)."""
    keys = jax.random.split(key, 1 + num_layers)
    emb = jax.random.normal(keys[0], (in_size, hidden_dim), jnp.float32)  # nn.Embedding: N(0,1)
    layers = []
    dims = [hidden_dim] + [out_dim] * num_layers
    for l in range(num_layers):
        fan_in, fan_out = dims[l], dims[l + 1]
        bound = math.sqrt(6.0 / (fan_in + fan_out))   # dgl GraphConv: xavier_uniform, zero bias
        w = jax.random.uniform(keys[1 + l], (fan_in, fan_out), jnp.float32,
                               minval=-bound, maxval=bound)
        b = jnp.zeros((fan_out,), jnp.float32)
        layers.append((w, b))
    return emb, layers


def _reference(batch, adj, emb_table, gcn_params):
    """Pure-JAX f32 reference of the PyTorch/DGL forward."""
    in_deg = jnp.maximum(adj.sum(axis=1), 1.0)
    out_deg = jnp.maximum(adj.sum(axis=0), 1.0)
    a_norm = adj * (in_deg[:, None] ** -0.5) * (out_deg[None, :] ** -0.5)
    h = emb_table[batch]
    for (w, b) in gcn_params:
        h = jnp.maximum(a_norm @ (h @ w) + b, 0.0)
    return h


# --------------------------------- main ------------------------------------ #

if __name__ == "__main__":
    in_size, hidden_dim, out_dim, num_layers = 10, 32, 32, 2
    n_nodes = 16

    key = jax.random.PRNGKey(0)
    k_batch, k_adj, k_params = jax.random.split(key, 3)

    batch = jax.random.randint(k_batch, (n_nodes,), 0, in_size, dtype=jnp.int32)

    # random undirected graph with self-loops (dense adjacency, A[dst, src])
    rand = (jax.random.uniform(k_adj, (n_nodes, n_nodes)) < 0.3).astype(jnp.float32)
    adj = jnp.clip(rand + rand.T + jnp.eye(n_nodes, dtype=jnp.float32), 0.0, 1.0)

    emb_table, gcn_params = init_params(k_params, in_size, hidden_dim, out_dim, num_layers)

    out = emb_gcn_encoder(batch, adj, emb_table, gcn_params)
    out = jax.block_until_ready(out)
    assert out.shape == (n_nodes, out_dim), out.shape

    ref = _reference(batch, adj, emb_table, gcn_params)
    max_err = float(jnp.max(jnp.abs(out - ref)))
    assert jnp.allclose(out, ref, rtol=5e-2, atol=5e-2), f"max abs err {max_err}"

    print("KERNEL_OK")
</pallas_src>

<mosaic_0001>
module attributes {stable_mosaic.version = 11 : i64} {
  func.func @_fused_encoder_kernel(%arg0: i32, %arg1: memref<128x128xf32, #tpu.memory_space<vmem>>, %arg2: memref<128x128xbf16, #tpu.memory_space<vmem>>, %arg3: memref<128x1xf32, #tpu.memory_space<vmem>>, %arg4: memref<128x1xf32, #tpu.memory_space<vmem>>, %arg5: memref<1x128x128xbf16, #tpu.memory_space<vmem>>, %arg6: memref<2x128xf32, #tpu.memory_space<vmem>>, %arg7: memref<128x128xf32, #tpu.memory_space<vmem>>) attributes {dimension_semantics = [#tpu.dimension_semantics<arbitrary>], iteration_bounds = array<i64: 1>, scalar_prefetch = 0 : i64, scratch_operands = 0 : i64, tpu.core_type = #tpu.core_type<tc>, window_params = [{pipeline_mode = #tpu.pipeline_mode<synchronous>, transform_indices = @transform_0, window_bounds = array<i64: 128, 128>}, {pipeline_mode = #tpu.pipeline_mode<synchronous>, transform_indices = @transform_1, window_bounds = array<i64: 128, 128>}, {pipeline_mode = #tpu.pipeline_mode<synchronous>, transform_indices = @transform_2, window_bounds = array<i64: 128, 1>}, {pipeline_mode = #tpu.pipeline_mode<synchronous>, transform_indices = @transform_3, window_bounds = array<i64: 128, 1>}, {pipeline_mode = #tpu.pipeline_mode<synchronous>, transform_indices = @transform_4, window_bounds = array<i64: 1, 128, 128>}, {pipeline_mode = #tpu.pipeline_mode<synchronous>, transform_indices = @transform_5, window_bounds = array<i64: 2, 128>}, {pipeline_mode = #tpu.pipeline_mode<synchronous>, transform_indices = @transform_6, window_bounds = array<i64: 128, 128>}]} {
    %c0 = arith.constant 0 : index
    %c0_0 = arith.constant 0 : index
    %0 = vector.load %arg2[%c0, %c0_0] : memref<128x128xbf16, #tpu.memory_space<vmem>>, vector<128x128xbf16>
    %c0_1 = arith.constant 0 : index
    %c0_2 = arith.constant 0 : index
    %1 = vector.load %arg3[%c0_1, %c0_2] : memref<128x1xf32, #tpu.memory_space<vmem>>, vector<128x1xf32>
    %c0_3 = arith.constant 0 : index
    %c0_4 = arith.constant 0 : index
    %2 = vector.load %arg4[%c0_3, %c0_4] : memref<128x1xf32, #tpu.memory_space<vmem>>, vector<128x1xf32>
    %c0_5 = arith.constant 0 : index
    %c0_6 = arith.constant 0 : index
    %3 = vector.load %arg1[%c0_5, %c0_6] : memref<128x128xf32, #tpu.memory_space<vmem>>, vector<128x128xf32>
    %4 = vector.broadcast %1 : vector<128x1xf32> to vector<128x128xf32>
    %5 = arith.mulf %3, %4 : vector<128x128xf32>
    %6 = arith.truncf %5 : vector<128x128xf32> to vector<128x128xbf16>
    %cst = arith.constant dense<0.000000e+00> : vector<128x128xf32>
    %7 = tpu.matmul %0, %6, %cst {dimension_numbers = #tpu.dot_dimension_numbers<[1], [0], [0], [1], [0, 0, 1, 1], [], []>} : vector<128x128xbf16>, vector<128x128xbf16>, vector<128x128xf32> -> vector<128x128xf32>
    %8 = vector.broadcast %2 : vector<128x1xf32> to vector<128x128xf32>
    %9 = arith.mulf %7, %8 : vector<128x128xf32>
    %c0_7 = arith.constant 0 : index
    %c0_8 = arith.constant 0 : index
    %10 = vector.load %arg6[%c0_7, %c0_8] : memref<2x128xf32, #tpu.memory_space<vmem>>, vector<1x128xf32>
    %11 = vector.broadcast %10 : vector<1x128xf32> to vector<128x128xf32>
    %12 = arith.addf %9, %11 : vector<128x128xf32>
    %cst_9 = arith.constant 0.000000e+00 : f32
    %13 = vector.broadcast %cst_9 : f32 to vector<128x128xf32>
    %14 = arith.maximumf %12, %13 : vector<128x128xf32>
    %15 = arith.truncf %14 : vector<128x128xf32> to vector<128x128xbf16>
    %c0_10 = arith.constant 0 : index
    %c0_11 = arith.constant 0 : index
    %c0_12 = arith.constant 0 : index
    %16 = vector.load %arg5[%c0_10, %c0_11, %c0_12] : memref<1x128x128xbf16, #tpu.memory_space<vmem>>, vector<1x128x128xbf16>
    %17 = vector.shape_cast %16 : vector<1x128x128xbf16> to vector<128x128xbf16>
    %cst_13 = arith.constant dense<0.000000e+00> : vector<128x128xf32>
    %18 = tpu.matmul %15, %17, %cst_13 {dimension_numbers = #tpu.dot_dimension_numbers<[1], [0], [0], [1], [0, 0, 1, 1], [], []>} : vector<128x128xbf16>, vector<128x128xbf16>, vector<128x128xf32> -> vector<128x128xf32>
    %19 = vector.broadcast %1 : vector<128x1xf32> to vector<128x128xf32>
    %20 = arith.mulf %18, %19 : vector<128x128xf32>
    %21 = arith.truncf %20 : vector<128x128xf32> to vector<128x128xbf16>
    %cst_14 = arith.constant dense<0.000000e+00> : vector<128x128xf32>
    %22 = tpu.matmul %0, %21, %cst_14 {dimension_numbers = #tpu.dot_dimension_numbers<[1], [0], [0], [1], [0, 0, 1, 1], [], []>} : vector<128x128xbf16>, vector<128x128xbf16>, vector<128x128xf32> -> vector<128x128xf32>
    %23 = vector.broadcast %2 : vector<128x1xf32> to vector<128x128xf32>
    %24 = arith.mulf %22, %23 : vector<128x128xf32>
    %c1 = arith.constant 1 : index
    %c0_15 = arith.constant 0 : index
    %25 = vector.load %arg6[%c1, %c0_15] : memref<2x128xf32, #tpu.memory_space<vmem>>, vector<1x128xf32>
    %26 = vector.broadcast %25 : vector<1x128xf32> to vector<128x128xf32>
    %27 = arith.addf %24, %26 : vector<128x128xf32>
    %cst_16 = arith.constant 0.000000e+00 : f32
    %28 = vector.broadcast %cst_16 : f32 to vector<128x128xf32>
    %29 = arith.maximumf %27, %28 : vector<128x128xf32>
    %c0_17 = arith.constant 0 : index
    %c0_18 = arith.constant 0 : index
    %30 = vector.load %arg7[%c0_17, %c0_18] : memref<128x128xf32, #tpu.memory_space<vmem>>, vector<128x128xf32>
    tpu.vector_store %arg7[%c0_17, %c0_18], %29 {strides = array<i32>} : memref<128x128xf32, #tpu.memory_space<vmem>>, vector<128x128xf32>,
    return
  }
  func.func @transform_0(%arg0: i32) -> (i32, i32) {
    %c0_i32 = arith.constant 0 : i32
    %c0_i32_0 = arith.constant 0 : i32
    %c0_i32_1 = arith.constant 0 : i32
    return %c0_i32, %c0_i32_0 : i32, i32
  }
  func.func @transform_1(%arg0: i32) -> (i32, i32) {
    %c0_i32 = arith.constant 0 : i32
    %c0_i32_0 = arith.constant 0 : i32
    %c0_i32_1 = arith.constant 0 : i32
    return %c0_i32, %c0_i32_0 : i32, i32
  }
  func.func @transform_2(%arg0: i32) -> (i32, i32) {
    %c0_i32 = arith.constant 0 : i32
    %c0_i32_0 = arith.constant 0 : i32
    %c0_i32_1 = arith.constant 0 : i32
    return %c0_i32, %c0_i32_0 : i32, i32
  }
  func.func @transform_3(%arg0: i32) -> (i32, i32) {
    %c0_i32 = arith.constant 0 : i32
    %c0_i32_0 = arith.constant 0 : i32
    %c0_i32_1 = arith.constant 0 : i32
    return %c0_i32, %c0_i32_0 : i32, i32
  }
  func.func @transform_4(%arg0: i32) -> (i32, i32, i32) {
    %c0_i32 = arith.constant 0 : i32
    %c0_i32_0 = arith.constant 0 : i32
    %c0_i32_1 = arith.constant 0 : i32
    %c0_i32_2 = arith.constant 0 : i32
    return %c0_i32, %c0_i32_0, %c0_i32_1 : i32, i32, i32
  }
  func.func @transform_5(%arg0: i32) -> (i32, i32) {
    %c0_i32 = arith.constant 0 : i32
    %c0_i32_0 = arith.constant 0 : i32
    %c0_i32_1 = arith.constant 0 : i32
    return %c0_i32, %c0_i32_0 : i32, i32
  }
  func.func @transform_6(%arg0: i32) -> (i32, i32) {
    %c0_i32 = arith.constant 0 : i32
    %c0_i32_0 = arith.constant 0 : i32
    %c0_i32_1 = arith.constant 0 : i32
    return %c0_i32, %c0_i32_0 : i32, i32
  }
}

module attributes {stable_mosaic.version = 11 : i64} {
  func.func @_fused_encoder_kernel(%arg0: i32, %arg1: memref<128x128xf32, #tpu.memory_space<vmem>>, %arg2: memref<128x128xbf16, #tpu.memory_space<vmem>>, %arg3: memref<128x1xf32, #tpu.memory_space<vmem>>, %arg4: memref<128x1xf32, #tpu.memory_space<vmem>>, %arg5: memref<1x128x128xbf16, #tpu.memory_space<vmem>>, %arg6: memref<2x128xf32, #tpu.memory_space<vmem>>, %arg7: memref<128x128xf32, #tpu.memory_space<vmem>>) attributes {dimension_semantics = [#tpu.dimension_semantics<arbitrary>], iteration_bounds = array<i64: 1>, scalar_prefetch = 0 : i64, scratch_operands = 0 : i64, tpu.core_type = #tpu.core_type<tc>, window_params = [{pipeline_mode = #tpu.pipeline_mode<synchronous>, transform_indices = @transform_0, window_bounds = array<i64: 128, 128>}, {pipeline_mode = #tpu.pipeline_mode<synchronous>, transform_indices = @transform_1, window_bounds = array<i64: 128, 128>}, {pipeline_mode = #tpu.pipeline_mode<synchronous>, transform_indices = @transform_2, window_bounds = array<i64: 128, 1>}, {pipeline_mode = #tpu.pipeline_mode<synchronous>, transform_indices = @transform_3, window_bounds = array<i64: 128, 1>}, {pipeline_mode = #tpu.pipeline_mode<synchronous>, transform_indices = @transform_4, window_bounds = array<i64: 1, 128, 128>}, {pipeline_mode = #tpu.pipeline_mode<synchronous>, transform_indices = @transform_5, window_bounds = array<i64: 2, 128>}, {pipeline_mode = #tpu.pipeline_mode<synchronous>, transform_indices = @transform_6, window_bounds = array<i64: 128, 128>}]} {
    %c0 = arith.constant 0 : index
    %c0_0 = arith.constant 0 : index
    %0 = vector.load %arg2[%c0, %c0_0] : memref<128x128xbf16, #tpu.memory_space<vmem>>, vector<128x128xbf16>
    %c0_1 = arith.constant 0 : index
    %c0_2 = arith.constant 0 : index
    %1 = vector.load %arg3[%c0_1, %c0_2] : memref<128x1xf32, #tpu.memory_space<vmem>>, vector<128x1xf32>
    %c0_3 = arith.constant 0 : index
    %c0_4 = arith.constant 0 : index
    %2 = vector.load %arg4[%c0_3, %c0_4] : memref<128x1xf32, #tpu.memory_space<vmem>>, vector<128x1xf32>
    %c0_5 = arith.constant 0 : index
    %c0_6 = arith.constant 0 : index
    %3 = vector.load %arg1[%c0_5, %c0_6] : memref<128x128xf32, #tpu.memory_space<vmem>>, vector<128x128xf32>
    %4 = vector.broadcast %1 : vector<128x1xf32> to vector<128x128xf32>
    %5 = arith.mulf %3, %4 : vector<128x128xf32>
    %6 = arith.truncf %5 : vector<128x128xf32> to vector<128x128xbf16>
    %cst = arith.constant dense<0.000000e+00> : vector<128x128xf32>
    %7 = tpu.matmul %0, %6, %cst {dimension_numbers = #tpu.dot_dimension_numbers<[1], [0], [0], [1], [0, 0, 1, 1], [], []>} : vector<128x128xbf16>, vector<128x128xbf16>, vector<128x128xf32> -> vector<128x128xf32>
    %8 = vector.broadcast %2 : vector<128x1xf32> to vector<128x128xf32>
    %9 = arith.mulf %7, %8 : vector<128x128xf32>
    %c0_7 = arith.constant 0 : index
    %c0_8 = arith.constant 0 : index
    %10 = vector.load %arg6[%c0_7, %c0_8] : memref<2x128xf32, #tpu.memory_space<vmem>>, vector<1x128xf32>
    %11 = vector.broadcast %10 : vector<1x128xf32> to vector<128x128xf32>
    %12 = arith.addf %9, %11 : vector<128x128xf32>
    %cst_9 = arith.constant 0.000000e+00 : f32
    %13 = vector.broadcast %cst_9 : f32 to vector<128x128xf32>
    %14 = arith.maximumf %12, %13 : vector<128x128xf32>
    %15 = arith.truncf %14 : vector<128x128xf32> to vector<128x128xbf16>
    %c0_10 = arith.constant 0 : index
    %c0_11 = arith.constant 0 : index
    %c0_12 = arith.constant 0 : index
    %16 = vector.load %arg5[%c0_10, %c0_11, %c0_12] : memref<1x128x128xbf16, #tpu.memory_space<vmem>>, vector<1x128x128xbf16>
    %17 = vector.shape_cast %16 : vector<1x128x128xbf16> to vector<128x128xbf16>
    %cst_13 = arith.constant dense<0.000000e+00> : vector<128x128xf32>
    %18 = tpu.matmul %15, %17, %cst_13 {dimension_numbers = #tpu.dot_dimension_numbers<[1], [0], [0], [1], [0, 0, 1, 1], [], []>} : vector<128x128xbf16>, vector<128x128xbf16>, vector<128x128xf32> -> vector<128x128xf32>
    %19 = vector.broadcast %1 : vector<128x1xf32> to vector<128x128xf32>
    %20 = arith.mulf %18, %19 : vector<128x128xf32>
    %21 = arith.truncf %20 : vector<128x128xf32> to vector<128x128xbf16>
    %cst_14 = arith.constant dense<0.000000e+00> : vector<128x128xf32>
    %22 = tpu.matmul %0, %21, %cst_14 {dimension_numbers = #tpu.dot_dimension_numbers<[1], [0], [0], [1], [0, 0, 1, 1], [], []>} : vector<128x128xbf16>, vector<128x128xbf16>, vector<128x128xf32> -> vector<128x128xf32>
    %23 = vector.broadcast %2 : vector<128x1xf32> to vector<128x128xf32>
    %24 = arith.mulf %22, %23 : vector<128x128xf32>
    %c1 = arith.constant 1 : index
    %c0_15 = arith.constant 0 : index
    %25 = vector.load %arg6[%c1, %c0_15] : memref<2x128xf32, #tpu.memory_space<vmem>>, vector<1x128xf32>
    %26 = vector.broadcast %25 : vector<1x128xf32> to vector<128x128xf32>
    %27 = arith.addf %24, %26 : vector<128x128xf32>
    %cst_16 = arith.constant 0.000000e+00 : f32
    %28 = vector.broadcast %cst_16 : f32 to vector<128x128xf32>
    %29 = arith.maximumf %27, %28 : vector<128x128xf32>
    %c0_17 = arith.constant 0 : index
    %c0_18 = arith.constant 0 : index
    %30 = vector.load %arg7[%c0_17, %c0_18] : memref<128x128xf32, #tpu.memory_space<vmem>>, vector<128x128xf32>
    tpu.vector_store %arg7[%c0_17, %c0_18], %29 {strides = array<i32>} : memref<128x128xf32, #tpu.memory_space<vmem>>, vector<128x128xf32>,
    return
  }
  func.func @transform_0(%arg0: i32) -> (i32, i32) {
    %c0_i32 = arith.constant 0 : i32
    %c0_i32_0 = arith.constant 0 : i32
    %c0_i32_1 = arith.constant 0 : i32
    return %c0_i32, %c0_i32_0 : i32, i32
  }
  func.func @transform_1(%arg0: i32) -> (i32, i32) {
    %c0_i32 = arith.constant 0 : i32
    %c0_i32_0 = arith.constant 0 : i32
    %c0_i32_1 = arith.constant 0 : i32
    return %c0_i32, %c0_i32_0 : i32, i32
  }
  func.func @transform_2(%arg0: i32) -> (i32, i32) {
    %c0_i32 = arith.constant 0 : i32
    %c0_i32_0 = arith.constant 0 : i32
    %c0_i32_1 = arith.constant 0 : i32
    return %c0_i32, %c0_i32_0 : i32, i32
  }
  func.func @transform_3(%arg0: i32) -> (i32, i32) {
    %c0_i32 = arith.constant 0 : i32
    %c0_i32_0 = arith.constant 0 : i32
    %c0_i32_1 = arith.constant 0 : i32
    return %c0_i32, %c0_i32_0 : i32, i32
  }
  func.func @transform_4(%arg0: i32) -> (i32, i32, i32) {
    %c0_i32 = arith.constant 0 : i32
    %c0_i32_0 = arith.constant 0 : i32
    %c0_i32_1 = arith.constant 0 : i32
    %c0_i32_2 = arith.constant 0 : i32
    return %c0_i32, %c0_i32_0, %c0_i32_1 : i32, i32, i32
  }
  func.func @transform_5(%arg0: i32) -> (i32, i32) {
    %c0_i32 = arith.constant 0 : i32
    %c0_i32_0 = arith.constant 0 : i32
    %c0_i32_1 = arith.constant 0 : i32
    return %c0_i32, %c0_i32_0 : i32, i32
  }
  func.func @transform_6(%arg0: i32) -> (i32, i32) {
    %c0_i32 = arith.constant 0 : i32
    %c0_i32_0 = arith.constant 0 : i32
    %c0_i32_1 = arith.constant 0 : i32
    return %c0_i32, %c0_i32_0 : i32, i32
  }
}

</mosaic_0001>

<llo_original>
// kernel: tpu_custom_call.1
$region0: #{tpu_custom_call.1}
  #allocation0 [shape = 'u32[]', space=smem, size = 0x4, offset = 0x4, fixed_abs, tag = 'smem constant byte address 0x4 - core index']
  #allocation1 [shape = 'u32[144,128]{1,0:T(1,128)}', space=vmem, size = 0x12000, scoped, tag = 'internal scratch']
  %s0 = inlined_call_operand.vmem [shape: f32[128,128], index: 0, kind: input, shape index: {}]
  %s1 = inlined_call_operand.vmem [shape: bf16[128,128], index: 1, kind: input, shape index: {}]
  %s2 = inlined_call_operand.vmem [shape: f32[128,1], index: 2, kind: input, shape index: {}]
  %s3 = inlined_call_operand.vmem [shape: f32[128,1], index: 3, kind: input, shape index: {}]
  %s4 = inlined_call_operand.vmem [shape: bf16[1,128,128], index: 4, kind: input, shape index: {}]
  %s5 = inlined_call_operand.vmem [shape: f32[2,128], index: 5, kind: input, shape index: {}]
  %s6 = inlined_call_operand.hbm [shape: f32[128,128], index: 6, kind: output, shape index: {}]
  %s7 = sld [smem:[#allocation0]]
  $region34: #{tpu_custom_call.1} parent=0
    _
  %s9 = ssub.s32 1, %s7
  %s10 = scalar_select 0, %s9, %s7
  $region1: #{tpu_custom_call.1} parent=0
    #allocation2 [shape = 'u8[65536]{0}', space=vmem, size = 0x10000, scoped, tag = 'output window, operand 0, single buffered']
    #allocation3 [shape = 's32[1]{0}', space=sflag, size = 0x4, scoped, tag = 'scoped memory for tpu_custom_call.1']
    %11 = vsyncpa [#allocation3], 0
    // Predicated region
    $region2: #{tpu_custom_call.1} parent=1 // pred_check
      _
    $region3: #{tpu_custom_call.1} parent=1 // pred_check_branch
      %13 = sbr.rel (0) target = $region5
    $region4: #{tpu_custom_call.1} parent=1 // pred_region
      _
    $region5: #{tpu_custom_call.1} parent=1 // pred_fallthru
      _
    // Predicated region
    $region6: #{tpu_custom_call.1} parent=1 // pred_check
      _
    $region7: #{tpu_custom_call.1} parent=1 // pred_check_branch
      %15 = sbr.rel (0) target = $region9
    $region8: #{tpu_custom_call.1} parent=1 // pred_region
      _
    $region9: #{tpu_custom_call.1} parent=1 // pred_fallthru
      _
    // Predicated region
    $region10: #{tpu_custom_call.1} parent=1 // pred_check
      _
    $region11: #{tpu_custom_call.1} parent=1 // pred_check_branch
      %17 = sbr.rel (0) target = $region13
    $region12: #{tpu_custom_call.1} parent=1 // pred_region
      _
    $region13: #{tpu_custom_call.1} parent=1 // pred_fallthru
      _
    // Predicated region
    $region14: #{tpu_custom_call.1} parent=1 // pred_check
      _
    $region15: #{tpu_custom_call.1} parent=1 // pred_check_branch
      %19 = sbr.rel (0) target = $region17
    $region16: #{tpu_custom_call.1} parent=1 // pred_region
      _
    $region17: #{tpu_custom_call.1} parent=1 // pred_fallthru
      _
    // Predicated region
    $region18: #{tpu_custom_call.1} parent=1 // pred_check
      _
    $region19: #{tpu_custom_call.1} parent=1 // pred_check_branch
      %21 = sbr.rel (0) target = $region21
    $region20: #{tpu_custom_call.1} parent=1 // pred_region
      _
    $region21: #{tpu_custom_call.1} parent=1 // pred_fallthru
      _
    // Predicated region
    $region22: #{tpu_custom_call.1} parent=1 // pred_check
      _
    $region23: #{tpu_custom_call.1} parent=1 // pred_check_branch
      %23 = sbr.rel (0) target = $region25
    $region24: #{tpu_custom_call.1} parent=1 // pred_region
      _
    $region25: #{tpu_custom_call.1} parent=1 // pred_fallthru
      _
    %v25 = vld [vmem:[%s1] sm:$0xf]
    %v26 = vld [vmem:[%s1 + $0x4] sm:$0xf]
    %v27 = vld [vmem:[%s1 + $0x8] sm:$0xf]
    %v28 = vld [vmem:[%s1 + $0xc] sm:$0xf]
    %v29 = vld [vmem:[%s1 + $0x10] sm:$0xf]
    %v30 = vld [vmem:[%s1 + $0x14] sm:$0xf]
    %v31 = vld [vmem:[%s1 + $0x18] sm:$0xf]
    %v32 = vld [vmem:[%s1 + $0x1c] sm:$0xf]
    %v33 = vld [vmem:[%s1 + $0x20] sm:$0xf]
    %v34 = vld [vmem:[%s1 + $0x24] sm:$0xf]
    %v35 = vld [vmem:[%s1 + $0x28] sm:$0xf]
    %v36 = vld [vmem:[%s1 + $0x2c] sm:$0xf]
    %v37 = vld [vmem:[%s1 + $0x30] sm:$0xf]
    %v38 = vld [vmem:[%s1 + $0x34] sm:$0xf]
    %v39 = vld [vmem:[%s1 + $0x38] sm:$0xf]
    %v40 = vld [vmem:[%s1 + $0x3c] sm:$0xf]
    %v41 = vld [vmem:[%s2] sm:$0xff]
    %v42 = vld [vmem:[%s2 + $0x8] sm:$0xff]
    %v43 = vld [vmem:[%s2 + $0x10] sm:$0xff]
    %v44 = vld [vmem:[%s2 + $0x18] sm:$0xff]
    %v45 = vld [vmem:[%s2 + $0x20] sm:$0xff]
    %v46 = vld [vmem:[%s2 + $0x28] sm:$0xff]
    %v47 = vld [vmem:[%s2 + $0x30] sm:$0xff]
    %v48 = vld [vmem:[%s2 + $0x38] sm:$0xff]
    %v49 = vld [vmem:[%s2 + $0x40] sm:$0xff]
    %v50 = vld [vmem:[%s2 + $0x48] sm:$0xff]
    %v51 = vld [vmem:[%s2 + $0x50] sm:$0xff]
    %v52 = vld [vmem:[%s2 + $0x58] sm:$0xff]
    %v53 = vld [vmem:[%s2 + $0x60] sm:$0xff]
    %v54 = vld [vmem:[%s2 + $0x68] sm:$0xff]
    %v55 = vld [vmem:[%s2 + $0x70] sm:$0xff]
    %v56 = vld [vmem:[%s2 + $0x78] sm:$0xff]
    %v57 = vld [vmem:[%s3] sm:$0xff]
    %v58 = vld [vmem:[%s3 + $0x8] sm:$0xff]
    %v59 = vld [vmem:[%s3 + $0x10] sm:$0xff]
    %v60 = vld [vmem:[%s3 + $0x18] sm:$0xff]
    %v61 = vld [vmem:[%s3 + $0x20] sm:$0xff]
    %v62 = vld [vmem:[%s3 + $0x28] sm:$0xff]
    %v63 = vld [vmem:[%s3 + $0x30] sm:$0xff]
    %v64 = vld [vmem:[%s3 + $0x38] sm:$0xff]
    %v65 = vld [vmem:[%s3 + $0x40] sm:$0xff]
    %v66 = vld [vmem:[%s3 + $0x48] sm:$0xff]
    %v67 = vld [vmem:[%s3 + $0x50] sm:$0xff]
    %v68 = vld [vmem:[%s3 + $0x58] sm:$0xff]
    %v69 = vld [vmem:[%s3 + $0x60] sm:$0xff]
    %v70 = vld [vmem:[%s3 + $0x68] sm:$0xff]
    %v71 = vld [vmem:[%s3 + $0x70] sm:$0xff]
    %v72 = vld [vmem:[%s3 + $0x78] sm:$0xff]
    %v73 = vld [vmem:[%s0] sm:$0xff]
    %v74 = vld [vmem:[%s0 + $0x8] sm:$0xff]
    %v75 = vld [vmem:[%s0 + $0x10] sm:$0xff]
    %v76 = vld [vmem:[%s0 + $0x18] sm:$0xff]
    %v77 = vld [vmem:[%s0 + $0x20] sm:$0xff]
    %v78 = vld [vmem:[%s0 + $0x28] sm:$0xff]
    %v79 = vld [vmem:[%s0 + $0x30] sm:$0xff]
    %v80 = vld [vmem:[%s0 + $0x38] sm:$0xff]
    %v81 = vld [vmem:[%s0 + $0x40] sm:$0xff]
    %v82 = vld [vmem:[%s0 + $0x48] sm:$0xff]
    %v83 = vld [vmem:[%s0 + $0x50] sm:$0xff]
    %v84 = vld [vmem:[%s0 + $0x58] sm:$0xff]
    %v85 = vld [vmem:[%s0 + $0x60] sm:$0xff]
    %v86 = vld [vmem:[%s0 + $0x68] sm:$0xff]
    %v87 = vld [vmem:[%s0 + $0x70] sm:$0xff]
    %v88 = vld [vmem:[%s0 + $0x78] sm:$0xff]
    %90 = vset.pattern.permute.xlu0 0
    %91 = vperm.xlu0 %90, %v41
    %v92 = vpop.permute.xlu0 %91
    %95 = vset.pattern.permute.xlu0 0
    %96 = vperm.xlu0 %95, %v42
    %v97 = vpop.permute.xlu0 %96
    %100 = vset.pattern.permute.xlu0 0
    %101 = vperm.xlu0 %100, %v43
    %v102 = vpop.permute.xlu0 %101
    %105 = vset.pattern.permute.xlu0 0
    %106 = vperm.xlu0 %105, %v44
    %v107 = vpop.permute.xlu0 %106
    %110 = vset.pattern.permute.xlu0 0
    %111 = vperm.xlu0 %110, %v45
    %v112 = vpop.permute.xlu0 %111
    %115 = vset.pattern.permute.xlu0 0
    %116 = vperm.xlu0 %115, %v46
    %v117 = vpop.permute.xlu0 %116
    %120 = vset.pattern.permute.xlu0 0
    %121 = vperm.xlu0 %120, %v47
    %v122 = vpop.permute.xlu0 %121
    %125 = vset.pattern.permute.xlu0 0
    %126 = vperm.xlu0 %125, %v48
    %v127 = vpop.permute.xlu0 %126
    %130 = vset.pattern.permute.xlu0 0
    %131 = vperm.xlu0 %130, %v49
    %v132 = vpop.permute.xlu0 %131
    %135 = vset.pattern.permute.xlu0 0
    %136 = vperm.xlu0 %135, %v50
    %v137 = vpop.permute.xlu0 %136
    %140 = vset.pattern.permute.xlu0 0
    %141 = vperm.xlu0 %140, %v51
    %v142 = vpop.permute.xlu0 %141
    %145 = vset.pattern.permute.xlu0 0
    %146 = vperm.xlu0 %145, %v52
    %v147 = vpop.permute.xlu0 %146
    %150 = vset.pattern.permute.xlu0 0
    %151 = vperm.xlu0 %150, %v53
    %v152 = vpop.permute.xlu0 %151
    %155 = vset.pattern.permute.xlu0 0
    %156 = vperm.xlu0 %155, %v54
    %v157 = vpop.permute.xlu0 %156
    %160 = vset.pattern.permute.xlu0 0
    %161 = vperm.xlu0 %160, %v55
    %v162 = vpop.permute.xlu0 %161
    %165 = vset.pattern.permute.xlu0 0
    %166 = vperm.xlu0 %165, %v56
    %v167 = vpop.permute.xlu0 %166
    %v169 = vmul.f32 %v73, %v92
    %v170 = vmul.f32 %v74, %v97
    %v171 = vmul.f32 %v75, %v102
    %v172 = vmul.f32 %v76, %v107
    %v173 = vmul.f32 %v77, %v112
    %v174 = vmul.f32 %v78, %v117
    %v175 = vmul.f32 %v79, %v122
    %v176 = vmul.f32 %v80, %v127
    %v177 = vmul.f32 %v81, %v132
    %v178 = vmul.f32 %v82, %v137
    %v179 = vmul.f32 %v83, %v142
    %v180 = vmul.f32 %v84, %v147
    %v181 = vmul.f32 %v85, %v152
    %v182 = vmul.f32 %v86, %v157
    %v183 = vmul.f32 %v87, %v162
    %v184 = vmul.f32 %v88, %v167
    %v185 = vpack.c.bf16 %v170, %v169
    %v186 = vpack.c.bf16 %v172, %v171
    %v187 = vpack.c.bf16 %v174, %v173
    %v188 = vpack.c.bf16 %v176, %v175
    %v189 = vpack.c.bf16 %v178, %v177
    %v190 = vpack.c.bf16 %v180, %v179
    %v191 = vpack.c.bf16 %v182, %v181
    %v192 = vpack.c.bf16 %v184, %v183
    %v209 = vunpack.c.l.b16 %v25
    %v210 = vunpack.c.l.b16 %v26
    %v211 = vunpack.c.l.b16 %v27
    %v212 = vunpack.c.l.b16 %v28
    %v213 = vunpack.c.l.b16 %v29
    %v214 = vunpack.c.l.b16 %v30
    %v215 = vunpack.c.l.b16 %v31
    %v216 = vunpack.c.l.b16 %v32
    %v217 = vunpack.c.l.b16 %v33
    %v218 = vunpack.c.l.b16 %v34
    %v219 = vunpack.c.l.b16 %v35
    %v220 = vunpack.c.l.b16 %v36
    %v221 = vunpack.c.l.b16 %v37
    %v222 = vunpack.c.l.b16 %v38
    %v223 = vunpack.c.l.b16 %v39
    %v224 = vunpack.c.l.b16 %v40
    %v225 = vpack.c.b16 %v210, %v209
    %v226 = vpack.c.b16 %v212, %v211
    %v227 = vpack.c.b16 %v214, %v213
    %v228 = vpack.c.b16 %v216, %v215
    %v229 = vpack.c.b16 %v218, %v217
    %v230 = vpack.c.b16 %v220, %v219
    %v231 = vpack.c.b16 %v222, %v221
    %v232 = vpack.c.b16 %v224, %v223
    %241 = vmatprep.subr.bf16.mxu0 0
    %242 = vmatpush1.bf16.msra.mxu0 %v185
    %243 = vmatprep.subr.bf16.mxu0 0
    %244 = vmatpush1.bf16.msra.mxu0 %v186
    %245 = vmatprep.subr.bf16.mxu0 0
    %246 = vmatpush1.bf16.msra.mxu0 %v187
    %247 = vmatprep.subr.bf16.mxu0 0
    %248 = vmatpush1.bf16.msra.mxu0 %v188
    %249 = vmatprep.subr.bf16.mxu0 0
    %250 = vmatpush1.bf16.msra.mxu0 %v189
    %251 = vmatprep.subr.bf16.mxu0 0
    %252 = vmatpush1.bf16.msra.mxu0 %v190
    %253 = vmatprep.subr.bf16.mxu0 0
    %254 = vmatpush1.bf16.msra.mxu0 %v191
    %255 = vmatprep.subr.bf16.mxu0 0
    %256 = vmatpush1.bf16.msra.mxu0 %v192
    %257 = vmatprep.subr.bf16.mxu0 0
    %258 = vmatpush1.bf16.msra.mxu0 0
    %259 = vmatprep.subr.bf16.mxu0 0
    %260 = vmatpush1.bf16.msra.mxu0 0
    %261 = vmatprep.subr.bf16.mxu0 0
    %262 = vmatpush1.bf16.msra.mxu0 0
    %263 = vmatprep.subr.bf16.mxu0 0
    %264 = vmatpush1.bf16.msra.mxu0 0
    %265 = vmatprep.subr.bf16.mxu0 0
    %266 = vmatpush1.bf16.msra.mxu0 0
    %267 = vmatprep.subr.bf16.mxu0 0
    %268 = vmatpush1.bf16.msra.mxu0 0
    %269 = vmatprep.subr.bf16.mxu0 0
    %270 = vmatpush1.bf16.msra.mxu0 0
    %271 = vmatprep.subr.bf16.mxu0 0
    %272 = vmatpush1.bf16.msra.mxu0 0
    %273 = vmatprep.mubr.bf16.mxu0 0
    %274 = vmatmul.mubr.bf16.gmra.mrb[0].mxu0 %v225
    %v275 = vpop.f32.mrb[0].mxu0
    %v276 = vadd.f32 0.0, %v275
    %v277 = vpop.f32.mrb[0].mxu0
    %v278 = vpop.f32.mrb[0].mxu0
    %v279 = vadd.f32 0.0, %v278
    %v280 = vpop.f32.mrb[0].mxu0
    %281 = vmatprep.mubr.bf16.mxu0 0
    %282 = vmatmul.mubr.bf16.gmra.mrb[0].mxu0 %v226
    %v283 = vpop.f32.mrb[0].mxu0
    %v284 = vadd.f32 0.0, %v283
    %v285 = vpop.f32.mrb[0].mxu0
    %v286 = vpop.f32.mrb[0].mxu0
    %v287 = vadd.f32 0.0, %v286
    %v288 = vpop.f32.mrb[0].mxu0
    %289 = vmatprep.mubr.bf16.mxu0 0
    %290 = vmatmul.mubr.bf16.gmra.mrb[0].mxu0 %v227
    %v291 = vpop.f32.mrb[0].mxu0
    %v292 = vadd.f32 0.0, %v291
    %v293 = vpop.f32.mrb[0].mxu0
    %v294 = vpop.f32.mrb[0].mxu0
    %v295 = vadd.f32 0.0, %v294
    %v296 = vpop.f32.mrb[0].mxu0
    %297 = vmatprep.mubr.bf16.mxu0 0
    %298 = vmatmul.mubr.bf16.gmra.mrb[0].mxu0 %v228
    %v299 = vpop.f32.mrb[0].mxu0
    %v300 = vadd.f32 0.0, %v299
    %v301 = vpop.f32.mrb[0].mxu0
    %v302 = vpop.f32.mrb[0].mxu0
    %v303 = vadd.f32 0.0, %v302
    %v304 = vpop.f32.mrb[0].mxu0
    %305 = vmatprep.mubr.bf16.mxu0 0
    %306 = vmatmul.mubr.bf16.gmra.mrb[0].mxu0 %v229
    %v307 = vpop.f32.mrb[0].mxu0
    %v308 = vadd.f32 0.0, %v307
    %v309 = vpop.f32.mrb[0].mxu0
    %v310 = vpop.f32.mrb[0].mxu0
    %v311 = vadd.f32 0.0, %v310
    %v312 = vpop.f32.mrb[0].mxu0
    %313 = vmatprep.mubr.bf16.mxu0 0
    %314 = vmatmul.mubr.bf16.gmra.mrb[0].mxu0 %v230
    %v315 = vpop.f32.mrb[0].mxu0
    %v316 = vadd.f32 0.0, %v315
    %v317 = vpop.f32.mrb[0].mxu0
    %v318 = vpop.f32.mrb[0].mxu0
    %v319 = vadd.f32 0.0, %v318
    %v320 = vpop.f32.mrb[0].mxu0
    %321 = vmatprep.mubr.bf16.mxu0 0
    %322 = vmatmul.mubr.bf16.gmra.mrb[0].mxu0 %v231
    %v323 = vpop.f32.mrb[0].mxu0
    %v324 = vadd.f32 0.0, %v323
    %v325 = vpop.f32.mrb[0].mxu0
    %v326 = vpop.f32.mrb[0].mxu0
    %v327 = vadd.f32 0.0, %v326
    %v328 = vpop.f32.mrb[0].mxu0
    %329 = vmatprep.mubr.bf16.mxu0 0
    %330 = vmatmul.mubr.bf16.gmra.mrb[0].mxu0 %v232
    %v331 = vpop.f32.mrb[0].mxu0
    %v332 = vadd.f32 0.0, %v331
    %v333 = vpop.f32.mrb[0].mxu0
    %v334 = vpop.f32.mrb[0].mxu0
    %v335 = vadd.f32 0.0, %v334
    %v336 = vpop.f32.mrb[0].mxu0
    %337 = vdwg.mxu0
    %339 = vset.pattern.permute.xlu0 0
    %340 = vperm.xlu0 %339, %v57
    %v341 = vpop.permute.xlu0 %340
    %344 = vset.pattern.permute.xlu0 0
    %345 = vperm.xlu0 %344, %v58
    %v346 = vpop.permute.xlu0 %345
    %349 = vset.pattern.permute.xlu0 0
    %350 = vperm.xlu0 %349, %v59
    %v351 = vpop.permute.xlu0 %350
    %354 = vset.pattern.permute.xlu0 0
    %355 = vperm.xlu0 %354, %v60
    %v356 = vpop.permute.xlu0 %355
    %359 = vset.pattern.permute.xlu0 0
    %360 = vperm.xlu0 %359, %v61
    %v361 = vpop.permute.xlu0 %360
    %364 = vset.pattern.permute.xlu0 0
    %365 = vperm.xlu0 %364, %v62
    %v366 = vpop.permute.xlu0 %365
    %369 = vset.pattern.permute.xlu0 0
    %370 = vperm.xlu0 %369, %v63
    %v371 = vpop.permute.xlu0 %370
    %374 = vset.pattern.permute.xlu0 0
    %375 = vperm.xlu0 %374, %v64
    %v376 = vpop.permute.xlu0 %375
    %379 = vset.pattern.permute.xlu0 0
    %380 = vperm.xlu0 %379, %v65
    %v381 = vpop.permute.xlu0 %380
    %384 = vset.pattern.permute.xlu0 0
    %385 = vperm.xlu0 %384, %v66
    %v386 = vpop.permute.xlu0 %385
    %389 = vset.pattern.permute.xlu0 0
    %390 = vperm.xlu0 %389, %v67
    %v391 = vpop.permute.xlu0 %390
    %394 = vset.pattern.permute.xlu0 0
    %395 = vperm.xlu0 %394, %v68
    %v396 = vpop.permute.xlu0 %395
    %399 = vset.pattern.permute.xlu0 0
    %400 = vperm.xlu0 %399, %v69
    %v401 = vpop.permute.xlu0 %400
    %404 = vset.pattern.permute.xlu0 0
    %405 = vperm.xlu0 %404, %v70
    %v406 = vpop.permute.xlu0 %405
    %409 = vset.pattern.permute.xlu0 0
    %410 = vperm.xlu0 %409, %v71
    %v411 = vpop.permute.xlu0 %410
    %414 = vset.pattern.permute.xlu0 0
    %415 = vperm.xlu0 %414, %v72
    %v416 = vpop.permute.xlu0 %415
    %v418 = vmul.f32 %v276, %v341
    %v419 = vmul.f32 %v279, %v346
    %v420 = vmul.f32 %v284, %v351
    %v421 = vmul.f32 %v287, %v356
    %v422 = vmul.f32 %v292, %v361
    %v423 = vmul.f32 %v295, %v366
    %v424 = vmul.f32 %v300, %v371
    %v425 = vmul.f32 %v303, %v376
    %v426 = vmul.f32 %v308, %v381
    %v427 = vmul.f32 %v311, %v386
    %v428 = vmul.f32 %v316, %v391
    %v429 = vmul.f32 %v319, %v396
    %v430 = vmul.f32 %v324, %v401
    %v431 = vmul.f32 %v327, %v406
    %v432 = vmul.f32 %v332, %v411
    %v433 = vmul.f32 %v335, %v416
    %v434 = vld [vmem:[%s5] sm:$0x1]
    %v435 = vlaneseq
    %v436 = vshrl.u32 %v435, 7
    %v437 = vsub.s32 0, %v436
    %v438 = vrot.slane %v434, %v437
    %v439 = vadd.f32 %v418, %v438
    %v440 = vadd.f32 %v419, %v438
    %v441 = vadd.f32 %v420, %v438
    %v442 = vadd.f32 %v421, %v438
    %v443 = vadd.f32 %v422, %v438
    %v444 = vadd.f32 %v423, %v438
    %v445 = vadd.f32 %v424, %v438
    %v446 = vadd.f32 %v425, %v438
    %v447 = vadd.f32 %v426, %v438
    %v448 = vadd.f32 %v427, %v438
    %v449 = vadd.f32 %v428, %v438
    %v450 = vadd.f32 %v429, %v438
    %v451 = vadd.f32 %v430, %v438
    %v452 = vadd.f32 %v431, %v438
    %v453 = vadd.f32 %v432, %v438
    %v454 = vadd.f32 %v433, %v438
    %v455 = vmax.f32 %v439, 0.0
    %v456 = vmax.f32 %v440, 0.0
    %v457 = vmax.f32 %v441, 0.0
    %v458 = vmax.f32 %v442, 0.0
    %v459 = vmax.f32 %v443, 0.0
    %v460 = vmax.f32 %v444, 0.0
    %v461 = vmax.f32 %v445, 0.0
    %v462 = vmax.f32 %v446, 0.0
    %v463 = vmax.f32 %v447, 0.0
    %v464 = vmax.f32 %v448, 0.0
    %v465 = vmax.f32 %v449, 0.0
    %v466 = vmax.f32 %v450, 0.0
    %v467 = vmax.f32 %v451, 0.0
    %v468 = vmax.f32 %v452, 0.0
    %v469 = vmax.f32 %v453, 0.0
    %v470 = vmax.f32 %v454, 0.0
    %v471 = vpack.c.bf16 %v456, %v455
    %v472 = vpack.c.bf16 %v458, %v457
    %v473 = vpack.c.bf16 %v460, %v459
    %v474 = vpack.c.bf16 %v462, %v461
    %v475 = vpack.c.bf16 %v464, %v463
    %v476 = vpack.c.bf16 %v466, %v465
    %v477 = vpack.c.bf16 %v468, %v467
    %v478 = vpack.c.bf16 %v470, %v469
    %v479 = vld [vmem:[%s4] sm:$0xf]
    %v480 = vld [vmem:[%s4 + $0x4] sm:$0xf]
    %v481 = vld [vmem:[%s4 + $0x8] sm:$0xf]
    %v482 = vld [vmem:[%s4 + $0xc] sm:$0xf]
    %v483 = vld [vmem:[%s4 + $0x10] sm:$0xf]
    %v484 = vld [vmem:[%s4 + $0x14] sm:$0xf]
    %v485 = vld [vmem:[%s4 + $0x18] sm:$0xf]
    %v486 = vld [vmem:[%s4 + $0x1c] sm:$0xf]
    %v487 = vld [vmem:[%s4 + $0x20] sm:$0xf]
    %v488 = vld [vmem:[%s4 + $0x24] sm:$0xf]
    %v489 = vld [vmem:[%s4 + $0x28] sm:$0xf]
    %v490 = vld [vmem:[%s4 + $0x2c] sm:$0xf]
    %v491 = vld [vmem:[%s4 + $0x30] sm:$0xf]
    %v492 = vld [vmem:[%s4 + $0x34] sm:$0xf]
    %v493 = vld [vmem:[%s4 + $0x38] sm:$0xf]
    %v494 = vld [vmem:[%s4 + $0x3c] sm:$0xf]
    %v511 = vunpack.c.l.b16 %v479
    %v512 = vunpack.c.l.b16 %v480
    %v513 = vunpack.c.l.b16 %v481
    %v514 = vunpack.c.l.b16 %v482
    %v515 = vunpack.c.l.b16 %v483
    %v516 = vunpack.c.l.b16 %v484
    %v517 = vunpack.c.l.b16 %v485
    %v518 = vunpack.c.l.b16 %v486
    %v519 = vunpack.c.l.b16 %v487
    %v520 = vunpack.c.l.b16 %v488
    %v521 = vunpack.c.l.b16 %v489
    %v522 = vunpack.c.l.b16 %v490
    %v523 = vunpack.c.l.b16 %v491
    %v524 = vunpack.c.l.b16 %v492
    %v525 = vunpack.c.l.b16 %v493
    %v526 = vunpack.c.l.b16 %v494
    %v527 = vpack.c.b16 %v512, %v511
    %v528 = vpack.c.b16 %v514, %v513
    %v529 = vpack.c.b16 %v516, %v515
    %v530 = vpack.c.b16 %v518, %v517
    %v531 = vpack.c.b16 %v520, %v519
    %v532 = vpack.c.b16 %v522, %v521
    %v533 = vpack.c.b16 %v524, %v523
    %v534 = vpack.c.b16 %v526, %v525
    %543 = vmatprep.subr.bf16.mxu0 0
    %544 = vmatpush1.bf16.msra.mxu0 %v527
    %545 = vmatprep.subr.bf16.mxu0 0
    %546 = vmatpush1.bf16.msra.mxu0 %v528
    %547 = vmatprep.subr.bf16.mxu0 0
    %548 = vmatpush1.bf16.msra.mxu0 %v529
    %549 = vmatprep.subr.bf16.mxu0 0
    %550 = vmatpush1.bf16.msra.mxu0 %v530
    %551 = vmatprep.subr.bf16.mxu0 0
    %552 = vmatpush1.bf16.msra.mxu0 %v531
    %553 = vmatprep.subr.bf16.mxu0 0
    %554 = vmatpush1.bf16.msra.mxu0 %v532
    %555 = vmatprep.subr.bf16.mxu0 0
    %556 = vmatpush1.bf16.msra.mxu0 %v533
    %557 = vmatprep.subr.bf16.mxu0 0
    %558 = vmatpush1.bf16.msra.mxu0 %v534
    %559 = vmatprep.subr.bf16.mxu0 0
    %560 = vmatpush1.bf16.msra.mxu0 0
    %561 = vmatprep.subr.bf16.mxu0 0
    %562 = vmatpush1.bf16.msra.mxu0 0
    %563 = vmatprep.subr.bf16.mxu0 0
    %564 = vmatpush1.bf16.msra.mxu0 0
    %565 = vmatprep.subr.bf16.mxu0 0
    %566 = vmatpush1.bf16.msra.mxu0 0
    %567 = vmatprep.subr.bf16.mxu0 0
    %568 = vmatpush1.bf16.msra.mxu0 0
    %569 = vmatprep.subr.bf16.mxu0 0
    %570 = vmatpush1.bf16.msra.mxu0 0
    %571 = vmatprep.subr.bf16.mxu0 0
    %572 = vmatpush1.bf16.msra.mxu0 0
    %573 = vmatprep.subr.bf16.mxu0 0
    %574 = vmatpush1.bf16.msra.mxu0 0
    %575 = vmatprep.mubr.bf16.mxu0 0
    %576 = vmatmul.mubr.bf16.gmra.mrb[0].mxu0 %v471
    %v577 = vpop.f32.mrb[0].mxu0
    %v578 = vadd.f32 0.0, %v577
    %v579 = vpop.f32.mrb[0].mxu0
    %v580 = vpop.f32.mrb[0].mxu0
    %v581 = vadd.f32 0.0, %v580
    %v582 = vpop.f32.mrb[0].mxu0
    %583 = vmatprep.mubr.bf16.mxu0 0
    %584 = vmatmul.mubr.bf16.gmra.mrb[0].mxu0 %v472
    %v585 = vpop.f32.mrb[0].mxu0
    %v586 = vadd.f32 0.0, %v585
    %v587 = vpop.f32.mrb[0].mxu0
    %v588 = vpop.f32.mrb[0].mxu0
    %v589 = vadd.f32 0.0, %v588
    %v590 = vpop.f32.mrb[0].mxu0
    %591 = vmatprep.mubr.bf16.mxu0 0
    %592 = vmatmul.mubr.bf16.gmra.mrb[0].mxu0 %v473
    %v593 = vpop.f32.mrb[0].mxu0
    %v594 = vadd.f32 0.0, %v593
    %v595 = vpop.f32.mrb[0].mxu0
    %v596 = vpop.f32.mrb[0].mxu0
    %v597 = vadd.f32 0.0, %v596
    %v598 = vpop.f32.mrb[0].mxu0
    %599 = vmatprep.mubr.bf16.mxu0 0
    %600 = vmatmul.mubr.bf16.gmra.mrb[0].mxu0 %v474
    %v601 = vpop.f32.mrb[0].mxu0
    %v602 = vadd.f32 0.0, %v601
    %v603 = vpop.f32.mrb[0].mxu0
    %v604 = vpop.f32.mrb[0].mxu0
    %v605 = vadd.f32 0.0, %v604
    %v606 = vpop.f32.mrb[0].mxu0
    %607 = vmatprep.mubr.bf16.mxu0 0
    %608 = vmatmul.mubr.bf16.gmra.mrb[0].mxu0 %v475
    %v609 = vpop.f32.mrb[0].mxu0
    %v610 = vadd.f32 0.0, %v609
    %v611 = vpop.f32.mrb[0].mxu0
    %v612 = vpop.f32.mrb[0].mxu0
    %v613 = vadd.f32 0.0, %v612
    %v614 = vpop.f32.mrb[0].mxu0
    %615 = vmatprep.mubr.bf16.mxu0 0
    %616 = vmatmul.mubr.bf16.gmra.mrb[0].mxu0 %v476
    %v617 = vpop.f32.mrb[0].mxu0
    %v618 = vadd.f32 0.0, %v617
    %v619 = vpop.f32.mrb[0].mxu0
    %v620 = vpop.f32.mrb[0].mxu0
    %v621 = vadd.f32 0.0, %v620
    %v622 = vpop.f32.mrb[0].mxu0
    %623 = vmatprep.mubr.bf16.mxu0 0
    %624 = vmatmul.mubr.bf16.gmra.mrb[0].mxu0 %v477
    %v625 = vpop.f32.mrb[0].mxu0
    %v626 = vadd.f32 0.0, %v625
    %v627 = vpop.f32.mrb[0].mxu0
    %v628 = vpop.f32.mrb[0].mxu0
    %v629 = vadd.f32 0.0, %v628
    %v630 = vpop.f32.mrb[0].mxu0
    %631 = vmatprep.mubr.bf16.mxu0 0
    %632 = vmatmul.mubr.bf16.gmra.mrb[0].mxu0 %v478
    %v633 = vpop.f32.mrb[0].mxu0
    %v634 = vadd.f32 0.0, %v633
    %v635 = vpop.f32.mrb[0].mxu0
    %v636 = vpop.f32.mrb[0].mxu0
    %v637 = vadd.f32 0.0, %v636
    %v638 = vpop.f32.mrb[0].mxu0
    %639 = vdwg.mxu0
    %v640 = vmul.f32 %v578, %v92
    %v641 = vmul.f32 %v581, %v97
    %v642 = vmul.f32 %v586, %v102
    %v643 = vmul.f32 %v589, %v107
    %v644 = vmul.f32 %v594, %v112
    %v645 = vmul.f32 %v597, %v117
    %v646 = vmul.f32 %v602, %v122
    %v647 = vmul.f32 %v605, %v127
    %v648 = vmul.f32 %v610, %v132
    %v649 = vmul.f32 %v613, %v137
    %v650 = vmul.f32 %v618, %v142
    %v651 = vmul.f32 %v621, %v147
    %v652 = vmul.f32 %v626, %v152
    %v653 = vmul.f32 %v629, %v157
    %v654 = vmul.f32 %v634, %v162
    %v655 = vmul.f32 %v637, %v167
    %v656 = vpack.c.bf16 %v641, %v640
    %v657 = vpack.c.bf16 %v643, %v642
    %v658 = vpack.c.bf16 %v645, %v644
    %v659 = vpack.c.bf16 %v647, %v646
    %v660 = vpack.c.bf16 %v649, %v648
    %v661 = vpack.c.bf16 %v651, %v650
    %v662 = vpack.c.bf16 %v653, %v652
    %v663 = vpack.c.bf16 %v655, %v654
    %664 = vmatprep.subr.bf16.mxu0 0
    %665 = vmatpush1.bf16.msra.mxu0 %v656
    %666 = vmatprep.subr.bf16.mxu0 0
    %667 = vmatpush1.bf16.msra.mxu0 %v657
    %668 = vmatprep.subr.bf16.mxu0 0
    %669 = vmatpush1.bf16.msra.mxu0 %v658
    %670 = vmatprep.subr.bf16.mxu0 0
    %671 = vmatpush1.bf16.msra.mxu0 %v659
    %672 = vmatprep.subr.bf16.mxu0 0
    %673 = vmatpush1.bf16.msra.mxu0 %v660
    %674 = vmatprep.subr.bf16.mxu0 0
    %675 = vmatpush1.bf16.msra.mxu0 %v661
    %676 = vmatprep.subr.bf16.mxu0 0
    %677 = vmatpush1.bf16.msra.mxu0 %v662
    %678 = vmatprep.subr.bf16.mxu0 0
    %679 = vmatpush1.bf16.msra.mxu0 %v663
    %680 = vmatprep.subr.bf16.mxu0 0
    %681 = vmatpush1.bf16.msra.mxu0 0
    %682 = vmatprep.subr.bf16.mxu0 0
    %683 = vmatpush1.bf16.msra.mxu0 0
    %684 = vmatprep.subr.bf16.mxu0 0
    %685 = vmatpush1.bf16.msra.mxu0 0
    %686 = vmatprep.subr.bf16.mxu0 0
    %687 = vmatpush1.bf16.msra.mxu0 0
    %688 = vmatprep.subr.bf16.mxu0 0
    %689 = vmatpush1.bf16.msra.mxu0 0
    %690 = vmatprep.subr.bf16.mxu0 0
    %691 = vmatpush1.bf16.msra.mxu0 0
    %692 = vmatprep.subr.bf16.mxu0 0
    %693 = vmatpush1.bf16.msra.mxu0 0
    %694 = vmatprep.subr.bf16.mxu0 0
    %695 = vmatpush1.bf16.msra.mxu0 0
    %696 = vmatprep.mubr.bf16.mxu0 0
    %697 = vmatmul.mubr.bf16.gmra.mrb[0].mxu0 %v225
    %v698 = vpop.f32.mrb[0].mxu0
    %v699 = vadd.f32 0.0, %v698
    %v700 = vpop.f32.mrb[0].mxu0
    %v701 = vpop.f32.mrb[0].mxu0
    %v702 = vadd.f32 0.0, %v701
    %v703 = vpop.f32.mrb[0].mxu0
    %704 = vmatprep.mubr.bf16.mxu0 0
    %705 = vmatmul.mubr.bf16.gmra.mrb[0].mxu0 %v226
    %v706 = vpop.f32.mrb[0].mxu0
    %v707 = vadd.f32 0.0, %v706
    %v708 = vpop.f32.mrb[0].mxu0
    %v709 = vpop.f32.mrb[0].mxu0
    %v710 = vadd.f32 0.0, %v709
    %v711 = vpop.f32.mrb[0].mxu0
    %712 = vmatprep.mubr.bf16.mxu0 0
    %713 = vmatmul.mubr.bf16.gmra.mrb[0].mxu0 %v227
    %v714 = vpop.f32.mrb[0].mxu0
    %v715 = vadd.f32 0.0, %v714
    %v716 = vpop.f32.mrb[0].mxu0
    %v717 = vpop.f32.mrb[0].mxu0
    %v718 = vadd.f32 0.0, %v717
    %v719 = vpop.f32.mrb[0].mxu0
    %720 = vmatprep.mubr.bf16.mxu0 0
    %721 = vmatmul.mubr.bf16.gmra.mrb[0].mxu0 %v228
    %v722 = vpop.f32.mrb[0].mxu0
    %v723 = vadd.f32 0.0, %v722
    %v724 = vpop.f32.mrb[0].mxu0
    %v725 = vpop.f32.mrb[0].mxu0
    %v726 = vadd.f32 0.0, %v725
    %v727 = vpop.f32.mrb[0].mxu0
    %728 = vmatprep.mubr.bf16.mxu0 0
    %729 = vmatmul.mubr.bf16.gmra.mrb[0].mxu0 %v229
    %v730 = vpop.f32.mrb[0].mxu0
    %v731 = vadd.f32 0.0, %v730
    %v732 = vpop.f32.mrb[0].mxu0
    %v733 = vpop.f32.mrb[0].mxu0
    %v734 = vadd.f32 0.0, %v733
    %v735 = vpop.f32.mrb[0].mxu0
    %736 = vmatprep.mubr.bf16.mxu0 0
    %737 = vmatmul.mubr.bf16.gmra.mrb[0].mxu0 %v230
    %v738 = vpop.f32.mrb[0].mxu0
    %v739 = vadd.f32 0.0, %v738
    %v740 = vpop.f32.mrb[0].mxu0
    %v741 = vpop.f32.mrb[0].mxu0
    %v742 = vadd.f32 0.0, %v741
    %v743 = vpop.f32.mrb[0].mxu0
    %744 = vmatprep.mubr.bf16.mxu0 0
    %745 = vmatmul.mubr.bf16.gmra.mrb[0].mxu0 %v231
    %v746 = vpop.f32.mrb[0].mxu0
    %v747 = vadd.f32 0.0, %v746
    %v748 = vpop.f32.mrb[0].mxu0
    %v749 = vpop.f32.mrb[0].mxu0
    %v750 = vadd.f32 0.0, %v749
    %v751 = vpop.f32.mrb[0].mxu0
    %752 = vmatprep.mubr.bf16.mxu0 0
    %753 = vmatmul.mubr.bf16.gmra.mrb[0].mxu0 %v232
    %v754 = vpop.f32.mrb[0].mxu0
    %v755 = vadd.f32 0.0, %v754
    %v756 = vpop.f32.mrb[0].mxu0
    %v757 = vpop.f32.mrb[0].mxu0
    %v758 = vadd.f32 0.0, %v757
    %v759 = vpop.f32.mrb[0].mxu0
    %760 = vdwg.mxu0
    %v761 = vmul.f32 %v699, %v341
    %v762 = vmul.f32 %v702, %v346
    %v763 = vmul.f32 %v707, %v351
    %v764 = vmul.f32 %v710, %v356
    %v765 = vmul.f32 %v715, %v361
    %v766 = vmul.f32 %v718, %v366
    %v767 = vmul.f32 %v723, %v371
    %v768 = vmul.f32 %v726, %v376
    %v769 = vmul.f32 %v731, %v381
    %v770 = vmul.f32 %v734, %v386
    %v771 = vmul.f32 %v739, %v391
    %v772 = vmul.f32 %v742, %v396
    %v773 = vmul.f32 %v747, %v401
    %v774 = vmul.f32 %v750, %v406
    %v775 = vmul.f32 %v755, %v411
    %v776 = vmul.f32 %v758, %v416
    %v777 = vld [vmem:[%s5 + $0x1] sm:$0x1]
    %v778 = vlaneseq
    %v779 = vshrl.u32 %v778, 7
    %v780 = vsub.s32 0, %v779
    %v781 = vrot.slane %v777, %v780
    %v782 = vadd.f32 %v761, %v781
    %v783 = vadd.f32 %v762, %v781
    %v784 = vadd.f32 %v763, %v781
    %v785 = vadd.f32 %v764, %v781
    %v786 = vadd.f32 %v765, %v781
    %v787 = vadd.f32 %v766, %v781
    %v788 = vadd.f32 %v767, %v781
    %v789 = vadd.f32 %v768, %v781
    %v790 = vadd.f32 %v769, %v781
    %v791 = vadd.f32 %v770, %v781
    %v792 = vadd.f32 %v771, %v781
    %v793 = vadd.f32 %v772, %v781
    %v794 = vadd.f32 %v773, %v781
    %v795 = vadd.f32 %v774, %v781
    %v796 = vadd.f32 %v775, %v781
    %v797 = vadd.f32 %v776, %v781
    %v798 = vmax.f32 %v782, 0.0
    %v799 = vmax.f32 %v783, 0.0
    %v800 = vmax.f32 %v784, 0.0
    %v801 = vmax.f32 %v785, 0.0
    %v802 = vmax.f32 %v786, 0.0
    %v803 = vmax.f32 %v787, 0.0
    %v804 = vmax.f32 %v788, 0.0
    %v805 = vmax.f32 %v789, 0.0
    %v806 = vmax.f32 %v790, 0.0
    %v807 = vmax.f32 %v791, 0.0
    %v808 = vmax.f32 %v792, 0.0
    %v809 = vmax.f32 %v793, 0.0
    %v810 = vmax.f32 %v794, 0.0
    %v811 = vmax.f32 %v795, 0.0
    %v812 = vmax.f32 %v796, 0.0
    %v813 = vmax.f32 %v797, 0.0
    %814 = vst [vmem:[#allocation2] sm:$0xff] %v798
    %815 = vst [vmem:[#allocation2 + $0x8] sm:$0xff] %v799
    %816 = vst [vmem:[#allocation2 + $0x10] sm:$0xff] %v800
    %817 = vst [vmem:[#allocation2 + $0x18] sm:$0xff] %v801
    %818 = vst [vmem:[#allocation2 + $0x20] sm:$0xff] %v802
    %819 = vst [vmem:[#allocation2 + $0x28] sm:$0xff] %v803
    %820 = vst [vmem:[#allocation2 + $0x30] sm:$0xff] %v804
    %821 = vst [vmem:[#allocation2 + $0x38] sm:$0xff] %v805
    %822 = vst [vmem:[#allocation2 + $0x40] sm:$0xff] %v806
    %823 = vst [vmem:[#allocation2 + $0x48] sm:$0xff] %v807
    %824 = vst [vmem:[#allocation2 + $0x50] sm:$0xff] %v808
    %825 = vst [vmem:[#allocation2 + $0x58] sm:$0xff] %v809
    %826 = vst [vmem:[#allocation2 + $0x60] sm:$0xff] %v810
    %827 = vst [vmem:[#allocation2 + $0x68] sm:$0xff] %v811
    %828 = vst [vmem:[#allocation2 + $0x70] sm:$0xff] %v812
    %829 = vst [vmem:[#allocation2 + $0x78] sm:$0xff] %v813
    // Predicated region
    $region26: #{tpu_custom_call.1} parent=1 // pred_check
      _
    $region27: #{tpu_custom_call.1} parent=1 // pred_check_branch
      %831 = sbr.rel (0) target = $region29
    $region28: #{tpu_custom_call.1} parent=1 // pred_region
      %s833 = ssub.s32 2048, 2048
      %834 = vsyncadd [#allocation3], %s833
      %s835 = sshll.u32 [#allocation2], 4
      %s836 = int_to_ptr.vmem [resolvable:$true] %s835
      %841 = dma.vmem_to_hbm [thread:$0]  %s836, 2048, %s6, [#allocation3], 128, 128, 8
    $region29: #{tpu_custom_call.1} parent=1 // pred_fallthru
      _
    // Predicated region
    $region30: #{tpu_custom_call.1} parent=1 // pred_check
      _
    $region31: #{tpu_custom_call.1} parent=1 // pred_check_branch
      %843 = sbr.rel (0) target = $region33
    $region32: #{tpu_custom_call.1} parent=1 // pred_region
      %844 = dma.done [#allocation3], 2048
    $region33: #{tpu_custom_call.1} parent=1 // pred_fallthru
      _
    %845 = vsyncpa [#allocation3], 1

// kernel: tpu_custom_call.1
$region0: #{tpu_custom_call.1}
  #allocation0 [shape = 'u32[]', space=smem, size = 0x4, offset = 0x4, fixed_abs, tag = 'smem constant byte address 0x4 - core index']
  #allocation1 [shape = 'u32[144,128]{1,0:T(1,128)}', space=vmem, size = 0x12000, scoped, tag = 'internal scratch']
  %s0 = inlined_call_operand.vmem [shape: f32[128,128], index: 0, kind: input, shape index: {}]
  %s1 = inlined_call_operand.vmem [shape: bf16[128,128], index: 1, kind: input, shape index: {}]
  %s2 = inlined_call_operand.vmem [shape: f32[128,1], index: 2, kind: input, shape index: {}]
  %s3 = inlined_call_operand.vmem [shape: f32[128,1], index: 3, kind: input, shape index: {}]
  %s4 = inlined_call_operand.vmem [shape: bf16[1,128,128], index: 4, kind: input, shape index: {}]
  %s5 = inlined_call_operand.vmem [shape: f32[2,128], index: 5, kind: input, shape index: {}]
  %s6 = inlined_call_operand.hbm [shape: f32[128,128], index: 6, kind: output, shape index: {}]
  %s7 = sld [smem:[#allocation0]]
  $region34: #{tpu_custom_call.1} parent=0
    _
  %s9 = ssub.s32 1, %s7
  %s10 = scalar_select 0, %s9, %s7
  $region1: #{tpu_custom_call.1} parent=0
    #allocation2 [shape = 'u8[65536]{0}', space=vmem, size = 0x10000, scoped, tag = 'output window, operand 0, single buffered']
    #allocation3 [shape = 's32[1]{0}', space=sflag, size = 0x4, scoped, tag = 'scoped memory for tpu_custom_call.1']
    %11 = vsyncpa [#allocation3], 0
    // Predicated region
    $region2: #{tpu_custom_call.1} parent=1 // pred_check
      _
    $region3: #{tpu_custom_call.1} parent=1 // pred_check_branch
      %13 = sbr.rel (0) target = $region5
    $region4: #{tpu_custom_call.1} parent=1 // pred_region
      _
    $region5: #{tpu_custom_call.1} parent=1 // pred_fallthru
      _
    // Predicated region
    $region6: #{tpu_custom_call.1} parent=1 // pred_check
      _
    $region7: #{tpu_custom_call.1} parent=1 // pred_check_branch
      %15 = sbr.rel (0) target = $region9
    $region8: #{tpu_custom_call.1} parent=1 // pred_region
      _
    $region9: #{tpu_custom_call.1} parent=1 // pred_fallthru
      _
    // Predicated region
    $region10: #{tpu_custom_call.1} parent=1 // pred_check
      _
    $region11: #{tpu_custom_call.1} parent=1 // pred_check_branch
      %17 = sbr.rel (0) target = $region13
    $region12: #{tpu_custom_call.1} parent=1 // pred_region
      _
    $region13: #{tpu_custom_call.1} parent=1 // pred_fallthru
      _
    // Predicated region
    $region14: #{tpu_custom_call.1} parent=1 // pred_check
      _
    $region15: #{tpu_custom_call.1} parent=1 // pred_check_branch
      %19 = sbr.rel (0) target = $region17
    $region16: #{tpu_custom_call.1} parent=1 // pred_region
      _
    $region17: #{tpu_custom_call.1} parent=1 // pred_fallthru
      _
    // Predicated region
    $region18: #{tpu_custom_call.1} parent=1 // pred_check
      _
    $region19: #{tpu_custom_call.1} parent=1 // pred_check_branch
      %21 = sbr.rel (0) target = $region21
    $region20: #{tpu_custom_call.1} parent=1 // pred_region
      _
    $region21: #{tpu_custom_call.1} parent=1 // pred_fallthru
      _
    // Predicated region
    $region22: #{tpu_custom_call.1} parent=1 // pred_check
      _
    $region23: #{tpu_custom_call.1} parent=1 // pred_check_branch
      %23 = sbr.rel (0) target = $region25
    $region24: #{tpu_custom_call.1} parent=1 // pred_region
      _
    $region25: #{tpu_custom_call.1} parent=1 // pred_fallthru
      _
    %v25 = vld [vmem:[%s1] sm:$0xf]
    %v26 = vld [vmem:[%s1 + $0x4] sm:$0xf]
    %v27 = vld [vmem:[%s1 + $0x8] sm:$0xf]
    %v28 = vld [vmem:[%s1 + $0xc] sm:$0xf]
    %v29 = vld [vmem:[%s1 + $0x10] sm:$0xf]
    %v30 = vld [vmem:[%s1 + $0x14] sm:$0xf]
    %v31 = vld [vmem:[%s1 + $0x18] sm:$0xf]
    %v32 = vld [vmem:[%s1 + $0x1c] sm:$0xf]
    %v33 = vld [vmem:[%s1 + $0x20] sm:$0xf]
    %v34 = vld [vmem:[%s1 + $0x24] sm:$0xf]
    %v35 = vld [vmem:[%s1 + $0x28] sm:$0xf]
    %v36 = vld [vmem:[%s1 + $0x2c] sm:$0xf]
    %v37 = vld [vmem:[%s1 + $0x30] sm:$0xf]
    %v38 = vld [vmem:[%s1 + $0x34] sm:$0xf]
    %v39 = vld [vmem:[%s1 + $0x38] sm:$0xf]
    %v40 = vld [vmem:[%s1 + $0x3c] sm:$0xf]
    %v41 = vld [vmem:[%s2] sm:$0xff]
    %v42 = vld [vmem:[%s2 + $0x8] sm:$0xff]
    %v43 = vld [vmem:[%s2 + $0x10] sm:$0xff]
    %v44 = vld [vmem:[%s2 + $0x18] sm:$0xff]
    %v45 = vld [vmem:[%s2 + $0x20] sm:$0xff]
    %v46 = vld [vmem:[%s2 + $0x28] sm:$0xff]
    %v47 = vld [vmem:[%s2 + $0x30] sm:$0xff]
    %v48 = vld [vmem:[%s2 + $0x38] sm:$0xff]
    %v49 = vld [vmem:[%s2 + $0x40] sm:$0xff]
    %v50 = vld [vmem:[%s2 + $0x48] sm:$0xff]
    %v51 = vld [vmem:[%s2 + $0x50] sm:$0xff]
    %v52 = vld [vmem:[%s2 + $0x58] sm:$0xff]
    %v53 = vld [vmem:[%s2 + $0x60] sm:$0xff]
    %v54 = vld [vmem:[%s2 + $0x68] sm:$0xff]
    %v55 = vld [vmem:[%s2 + $0x70] sm:$0xff]
    %v56 = vld [vmem:[%s2 + $0x78] sm:$0xff]
    %v57 = vld [vmem:[%s3] sm:$0xff]
    %v58 = vld [vmem:[%s3 + $0x8] sm:$0xff]
    %v59 = vld [vmem:[%s3 + $0x10] sm:$0xff]
    %v60 = vld [vmem:[%s3 + $0x18] sm:$0xff]
    %v61 = vld [vmem:[%s3 + $0x20] sm:$0xff]
    %v62 = vld [vmem:[%s3 + $0x28] sm:$0xff]
    %v63 = vld [vmem:[%s3 + $0x30] sm:$0xff]
    %v64 = vld [vmem:[%s3 + $0x38] sm:$0xff]
    %v65 = vld [vmem:[%s3 + $0x40] sm:$0xff]
    %v66 = vld [vmem:[%s3 + $0x48] sm:$0xff]
    %v67 = vld [vmem:[%s3 + $0x50] sm:$0xff]
    %v68 = vld [vmem:[%s3 + $0x58] sm:$0xff]
    %v69 = vld [vmem:[%s3 + $0x60] sm:$0xff]
    %v70 = vld [vmem:[%s3 + $0x68] sm:$0xff]
    %v71 = vld [vmem:[%s3 + $0x70] sm:$0xff]
    %v72 = vld [vmem:[%s3 + $0x78] sm:$0xff]
    %v73 = vld [vmem:[%s0] sm:$0xff]
    %v74 = vld [vmem:[%s0 + $0x8] sm:$0xff]
    %v75 = vld [vmem:[%s0 + $0x10] sm:$0xff]
    %v76 = vld [vmem:[%s0 + $0x18] sm:$0xff]
    %v77 = vld [vmem:[%s0 + $0x20] sm:$0xff]
    %v78 = vld [vmem:[%s0 + $0x28] sm:$0xff]
    %v79 = vld [vmem:[%s0 + $0x30] sm:$0xff]
    %v80 = vld [vmem:[%s0 + $0x38] sm:$0xff]
    %v81 = vld [vmem:[%s0 + $0x40] sm:$0xff]
    %v82 = vld [vmem:[%s0 + $0x48] sm:$0xff]
    %v83 = vld [vmem:[%s0 + $0x50] sm:$0xff]
    %v84 = vld [vmem:[%s0 + $0x58] sm:$0xff]
    %v85 = vld [vmem:[%s0 + $0x60] sm:$0xff]
    %v86 = vld [vmem:[%s0 + $0x68] sm:$0xff]
    %v87 = vld [vmem:[%s0 + $0x70] sm:$0xff]
    %v88 = vld [vmem:[%s0 + $0x78] sm:$0xff]
    %90 = vset.pattern.permute.xlu0 0
    %91 = vperm.xlu0 %90, %v41
    %v92 = vpop.permute.xlu0 %91
    %95 = vset.pattern.permute.xlu0 0
    %96 = vperm.xlu0 %95, %v42
    %v97 = vpop.permute.xlu0 %96
    %100 = vset.pattern.permute.xlu0 0
    %101 = vperm.xlu0 %100, %v43
    %v102 = vpop.permute.xlu0 %101
    %105 = vset.pattern.permute.xlu0 0
    %106 = vperm.xlu0 %105, %v44
    %v107 = vpop.permute.xlu0 %106
    %110 = vset.pattern.permute.xlu0 0
    %111 = vperm.xlu0 %110, %v45
    %v112 = vpop.permute.xlu0 %111
    %115 = vset.pattern.permute.xlu0 0
    %116 = vperm.xlu0 %115, %v46
    %v117 = vpop.permute.xlu0 %116
    %120 = vset.pattern.permute.xlu0 0
    %121 = vperm.xlu0 %120, %v47
    %v122 = vpop.permute.xlu0 %121
    %125 = vset.pattern.permute.xlu0 0
    %126 = vperm.xlu0 %125, %v48
    %v127 = vpop.permute.xlu0 %126
    %130 = vset.pattern.permute.xlu0 0
    %131 = vperm.xlu0 %130, %v49
    %v132 = vpop.permute.xlu0 %131
    %135 = vset.pattern.permute.xlu0 0
    %136 = vperm.xlu0 %135, %v50
    %v137 = vpop.permute.xlu0 %136
    %140 = vset.pattern.permute.xlu0 0
    %141 = vperm.xlu0 %140, %v51
    %v142 = vpop.permute.xlu0 %141
    %145 = vset.pattern.permute.xlu0 0
    %146 = vperm.xlu0 %145, %v52
    %v147 = vpop.permute.xlu0 %146
    %150 = vset.pattern.permute.xlu0 0
    %151 = vperm.xlu0 %150, %v53
    %v152 = vpop.permute.xlu0 %151
    %155 = vset.pattern.permute.xlu0 0
    %156 = vperm.xlu0 %155, %v54
    %v157 = vpop.permute.xlu0 %156
    %160 = vset.pattern.permute.xlu0 0
    %161 = vperm.xlu0 %160, %v55
    %v162 = vpop.permute.xlu0 %161
    %165 = vset.pattern.permute.xlu0 0
    %166 = vperm.xlu0 %165, %v56
    %v167 = vpop.permute.xlu0 %166
    %v169 = vmul.f32 %v73, %v92
    %v170 = vmul.f32 %v74, %v97
    %v171 = vmul.f32 %v75, %v102
    %v172 = vmul.f32 %v76, %v107
    %v173 = vmul.f32 %v77, %v112
    %v174 = vmul.f32 %v78, %v117
    %v175 = vmul.f32 %v79, %v122
    %v176 = vmul.f32 %v80, %v127
    %v177 = vmul.f32 %v81, %v132
    %v178 = vmul.f32 %v82, %v137
    %v179 = vmul.f32 %v83, %v142
    %v180 = vmul.f32 %v84, %v147
    %v181 = vmul.f32 %v85, %v152
    %v182 = vmul.f32 %v86, %v157
    %v183 = vmul.f32 %v87, %v162
    %v184 = vmul.f32 %v88, %v167
    %v185 = vpack.c.bf16 %v170, %v169
    %v186 = vpack.c.bf16 %v172, %v171
    %v187 = vpack.c.bf16 %v174, %v173
    %v188 = vpack.c.bf16 %v176, %v175
    %v189 = vpack.c.bf16 %v178, %v177
    %v190 = vpack.c.bf16 %v180, %v179
    %v191 = vpack.c.bf16 %v182, %v181
    %v192 = vpack.c.bf16 %v184, %v183
    %v209 = vunpack.c.l.b16 %v25
    %v210 = vunpack.c.l.b16 %v26
    %v211 = vunpack.c.l.b16 %v27
    %v212 = vunpack.c.l.b16 %v28
    %v213 = vunpack.c.l.b16 %v29
    %v214 = vunpack.c.l.b16 %v30
    %v215 = vunpack.c.l.b16 %v31
    %v216 = vunpack.c.l.b16 %v32
    %v217 = vunpack.c.l.b16 %v33
    %v218 = vunpack.c.l.b16 %v34
    %v219 = vunpack.c.l.b16 %v35
    %v220 = vunpack.c.l.b16 %v36
    %v221 = vunpack.c.l.b16 %v37
    %v222 = vunpack.c.l.b16 %v38
    %v223 = vunpack.c.l.b16 %v39
    %v224 = vunpack.c.l.b16 %v40
    %v225 = vpack.c.b16 %v210, %v209
    %v226 = vpack.c.b16 %v212, %v211
    %v227 = vpack.c.b16 %v214, %v213
    %v228 = vpack.c.b16 %v216, %v215
    %v229 = vpack.c.b16 %v218, %v217
    %v230 = vpack.c.b16 %v220, %v219
    %v231 = vpack.c.b16 %v222, %v221
    %v232 = vpack.c.b16 %v224, %v223
    %241 = vmatprep.subr.bf16.mxu0 0
    %242 = vmatpush1.bf16.msra.mxu0 %v185
    %243 = vmatprep.subr.bf16.mxu0 0
    %244 = vmatpush1.bf16.msra.mxu0 %v186
    %245 = vmatprep.subr.bf16.mxu0 0
    %246 = vmatpush1.bf16.msra.mxu0 %v187
    %247 = vmatprep.subr.bf16.mxu0 0
    %248 = vmatpush1.bf16.msra.mxu0 %v188
    %249 = vmatprep.subr.bf16.mxu0 0
    %250 = vmatpush1.bf16.msra.mxu0 %v189
    %251 = vmatprep.subr.bf16.mxu0 0
    %252 = vmatpush1.bf16.msra.mxu0 %v190
    %253 = vmatprep.subr.bf16.mxu0 0
    %254 = vmatpush1.bf16.msra.mxu0 %v191
    %255 = vmatprep.subr.bf16.mxu0 0
    %256 = vmatpush1.bf16.msra.mxu0 %v192
    %257 = vmatprep.subr.bf16.mxu0 0
    %258 = vmatpush1.bf16.msra.mxu0 0
    %259 = vmatprep.subr.bf16.mxu0 0
    %260 = vmatpush1.bf16.msra.mxu0 0
    %261 = vmatprep.subr.bf16.mxu0 0
    %262 = vmatpush1.bf16.msra.mxu0 0
    %263 = vmatprep.subr.bf16.mxu0 0
    %264 = vmatpush1.bf16.msra.mxu0 0
    %265 = vmatprep.subr.bf16.mxu0 0
    %266 = vmatpush1.bf16.msra.mxu0 0
    %267 = vmatprep.subr.bf16.mxu0 0
    %268 = vmatpush1.bf16.msra.mxu0 0
    %269 = vmatprep.subr.bf16.mxu0 0
    %270 = vmatpush1.bf16.msra.mxu0 0
    %271 = vmatprep.subr.bf16.mxu0 0
    %272 = vmatpush1.bf16.msra.mxu0 0
    %273 = vmatprep.mubr.bf16.mxu0 0
    %274 = vmatmul.mubr.bf16.gmra.mrb[0].mxu0 %v225
    %v275 = vpop.f32.mrb[0].mxu0
    %v276 = vadd.f32 0.0, %v275
    %v277 = vpop.f32.mrb[0].mxu0
    %v278 = vpop.f32.mrb[0].mxu0
    %v279 = vadd.f32 0.0, %v278
    %v280 = vpop.f32.mrb[0].mxu0
    %281 = vmatprep.mubr.bf16.mxu0 0
    %282 = vmatmul.mubr.bf16.gmra.mrb[0].mxu0 %v226
    %v283 = vpop.f32.mrb[0].mxu0
    %v284 = vadd.f32 0.0, %v283
    %v285 = vpop.f32.mrb[0].mxu0
    %v286 = vpop.f32.mrb[0].mxu0
    %v287 = vadd.f32 0.0, %v286
    %v288 = vpop.f32.mrb[0].mxu0
    %289 = vmatprep.mubr.bf16.mxu0 0
    %290 = vmatmul.mubr.bf16.gmra.mrb[0].mxu0 %v227
    %v291 = vpop.f32.mrb[0].mxu0
    %v292 = vadd.f32 0.0, %v291
    %v293 = vpop.f32.mrb[0].mxu0
    %v294 = vpop.f32.mrb[0].mxu0
    %v295 = vadd.f32 0.0, %v294
    %v296 = vpop.f32.mrb[0].mxu0
    %297 = vmatprep.mubr.bf16.mxu0 0
    %298 = vmatmul.mubr.bf16.gmra.mrb[0].mxu0 %v228
    %v299 = vpop.f32.mrb[0].mxu0
    %v300 = vadd.f32 0.0, %v299
    %v301 = vpop.f32.mrb[0].mxu0
    %v302 = vpop.f32.mrb[0].mxu0
    %v303 = vadd.f32 0.0, %v302
    %v304 = vpop.f32.mrb[0].mxu0
    %305 = vmatprep.mubr.bf16.mxu0 0
    %306 = vmatmul.mubr.bf16.gmra.mrb[0].mxu0 %v229
    %v307 = vpop.f32.mrb[0].mxu0
    %v308 = vadd.f32 0.0, %v307
    %v309 = vpop.f32.mrb[0].mxu0
    %v310 = vpop.f32.mrb[0].mxu0
    %v311 = vadd.f32 0.0, %v310
    %v312 = vpop.f32.mrb[0].mxu0
    %313 = vmatprep.mubr.bf16.mxu0 0
    %314 = vmatmul.mubr.bf16.gmra.mrb[0].mxu0 %v230
    %v315 = vpop.f32.mrb[0].mxu0
    %v316 = vadd.f32 0.0, %v315
    %v317 = vpop.f32.mrb[0].mxu0
    %v318 = vpop.f32.mrb[0].mxu0
    %v319 = vadd.f32 0.0, %v318
    %v320 = vpop.f32.mrb[0].mxu0
    %321 = vmatprep.mubr.bf16.mxu0 0
    %322 = vmatmul.mubr.bf16.gmra.mrb[0].mxu0 %v231
    %v323 = vpop.f32.mrb[0].mxu0
    %v324 = vadd.f32 0.0, %v323
    %v325 = vpop.f32.mrb[0].mxu0
    %v326 = vpop.f32.mrb[0].mxu0
    %v327 = vadd.f32 0.0, %v326
    %v328 = vpop.f32.mrb[0].mxu0
    %329 = vmatprep.mubr.bf16.mxu0 0
    %330 = vmatmul.mubr.bf16.gmra.mrb[0].mxu0 %v232
    %v331 = vpop.f32.mrb[0].mxu0
    %v332 = vadd.f32 0.0, %v331
    %v333 = vpop.f32.mrb[0].mxu0
    %v334 = vpop.f32.mrb[0].mxu0
    %v335 = vadd.f32 0.0, %v334
    %v336 = vpop.f32.mrb[0].mxu0
    %337 = vdwg.mxu0
    %339 = vset.pattern.permute.xlu0 0
    %340 = vperm.xlu0 %339, %v57
    %v341 = vpop.permute.xlu0 %340
    %344 = vset.pattern.permute.xlu0 0
    %345 = vperm.xlu0 %344, %v58
    %v346 = vpop.permute.xlu0 %345
    %349 = vset.pattern.permute.xlu0 0
    %350 = vperm.xlu0 %349, %v59
    %v351 = vpop.permute.xlu0 %350
    %354 = vset.pattern.permute.xlu0 0
    %355 = vperm.xlu0 %354, %v60
    %v356 = vpop.permute.xlu0 %355
    %359 = vset.pattern.permute.xlu0 0
    %360 = vperm.xlu0 %359, %v61
    %v361 = vpop.permute.xlu0 %360
    %364 = vset.pattern.permute.xlu0 0
    %365 = vperm.xlu0 %364, %v62
    %v366 = vpop.permute.xlu0 %365
    %369 = vset.pattern.permute.xlu0 0
    %370 = vperm.xlu0 %369, %v63
    %v371 = vpop.permute.xlu0 %370
    %374 = vset.pattern.permute.xlu0 0
    %375 = vperm.xlu0 %374, %v64
    %v376 = vpop.permute.xlu0 %375
    %379 = vset.pattern.permute.xlu0 0
    %380 = vperm.xlu0 %379, %v65
    %v381 = vpop.permute.xlu0 %380
    %384 = vset.pattern.permute.xlu0 0
    %385 = vperm.xlu0 %384, %v66
    %v386 = vpop.permute.xlu0 %385
    %389 = vset.pattern.permute.xlu0 0
    %390 = vperm.xlu0 %389, %v67
    %v391 = vpop.permute.xlu0 %390
    %394 = vset.pattern.permute.xlu0 0
    %395 = vperm.xlu0 %394, %v68
    %v396 = vpop.permute.xlu0 %395
    %399 = vset.pattern.permute.xlu0 0
    %400 = vperm.xlu0 %399, %v69
    %v401 = vpop.permute.xlu0 %400
    %404 = vset.pattern.permute.xlu0 0
    %405 = vperm.xlu0 %404, %v70
    %v406 = vpop.permute.xlu0 %405
    %409 = vset.pattern.permute.xlu0 0
    %410 = vperm.xlu0 %409, %v71
    %v411 = vpop.permute.xlu0 %410
    %414 = vset.pattern.permute.xlu0 0
    %415 = vperm.xlu0 %414, %v72
    %v416 = vpop.permute.xlu0 %415
    %v418 = vmul.f32 %v276, %v341
    %v419 = vmul.f32 %v279, %v346
    %v420 = vmul.f32 %v284, %v351
    %v421 = vmul.f32 %v287, %v356
    %v422 = vmul.f32 %v292, %v361
    %v423 = vmul.f32 %v295, %v366
    %v424 = vmul.f32 %v300, %v371
    %v425 = vmul.f32 %v303, %v376
    %v426 = vmul.f32 %v308, %v381
    %v427 = vmul.f32 %v311, %v386
    %v428 = vmul.f32 %v316, %v391
    %v429 = vmul.f32 %v319, %v396
    %v430 = vmul.f32 %v324, %v401
    %v431 = vmul.f32 %v327, %v406
    %v432 = vmul.f32 %v332, %v411
    %v433 = vmul.f32 %v335, %v416
    %v434 = vld [vmem:[%s5] sm:$0x1]
    %v435 = vlaneseq
    %v436 = vshrl.u32 %v435, 7
    %v437 = vsub.s32 0, %v436
    %v438 = vrot.slane %v434, %v437
    %v439 = vadd.f32 %v418, %v438
    %v440 = vadd.f32 %v419, %v438
    %v441 = vadd.f32 %v420, %v438
    %v442 = vadd.f32 %v421, %v438
    %v443 = vadd.f32 %v422, %v438
    %v444 = vadd.f32 %v423, %v438
    %v445 = vadd.f32 %v424, %v438
    %v446 = vadd.f32 %v425, %v438
    %v447 = vadd.f32 %v426, %v438
    %v448 = vadd.f32 %v427, %v438
    %v449 = vadd.f32 %v428, %v438
    %v450 = vadd.f32 %v429, %v438
    %v451 = vadd.f32 %v430, %v438
    %v452 = vadd.f32 %v431, %v438
    %v453 = vadd.f32 %v432, %v438
    %v454 = vadd.f32 %v433, %v438
    %v455 = vmax.f32 %v439, 0.0
    %v456 = vmax.f32 %v440, 0.0
    %v457 = vmax.f32 %v441, 0.0
    %v458 = vmax.f32 %v442, 0.0
    %v459 = vmax.f32 %v443, 0.0
    %v460 = vmax.f32 %v444, 0.0
    %v461 = vmax.f32 %v445, 0.0
    %v462 = vmax.f32 %v446, 0.0
    %v463 = vmax.f32 %v447, 0.0
    %v464 = vmax.f32 %v448, 0.0
    %v465 = vmax.f32 %v449, 0.0
    %v466 = vmax.f32 %v450, 0.0
    %v467 = vmax.f32 %v451, 0.0
    %v468 = vmax.f32 %v452, 0.0
    %v469 = vmax.f32 %v453, 0.0
    %v470 = vmax.f32 %v454, 0.0
    %v471 = vpack.c.bf16 %v456, %v455
    %v472 = vpack.c.bf16 %v458, %v457
    %v473 = vpack.c.bf16 %v460, %v459
    %v474 = vpack.c.bf16 %v462, %v461
    %v475 = vpack.c.bf16 %v464, %v463
    %v476 = vpack.c.bf16 %v466, %v465
    %v477 = vpack.c.bf16 %v468, %v467
    %v478 = vpack.c.bf16 %v470, %v469
    %v479 = vld [vmem:[%s4] sm:$0xf]
    %v480 = vld [vmem:[%s4 + $0x4] sm:$0xf]
    %v481 = vld [vmem:[%s4 + $0x8] sm:$0xf]
    %v482 = vld [vmem:[%s4 + $0xc] sm:$0xf]
    %v483 = vld [vmem:[%s4 + $0x10] sm:$0xf]
    %v484 = vld [vmem:[%s4 + $0x14] sm:$0xf]
    %v485 = vld [vmem:[%s4 + $0x18] sm:$0xf]
    %v486 = vld [vmem:[%s4 + $0x1c] sm:$0xf]
    %v487 = vld [vmem:[%s4 + $0x20] sm:$0xf]
    %v488 = vld [vmem:[%s4 + $0x24] sm:$0xf]
    %v489 = vld [vmem:[%s4 + $0x28] sm:$0xf]
    %v490 = vld [vmem:[%s4 + $0x2c] sm:$0xf]
    %v491 = vld [vmem:[%s4 + $0x30] sm:$0xf]
    %v492 = vld [vmem:[%s4 + $0x34] sm:$0xf]
    %v493 = vld [vmem:[%s4 + $0x38] sm:$0xf]
    %v494 = vld [vmem:[%s4 + $0x3c] sm:$0xf]
    %v511 = vunpack.c.l.b16 %v479
    %v512 = vunpack.c.l.b16 %v480
    %v513 = vunpack.c.l.b16 %v481
    %v514 = vunpack.c.l.b16 %v482
    %v515 = vunpack.c.l.b16 %v483
    %v516 = vunpack.c.l.b16 %v484
    %v517 = vunpack.c.l.b16 %v485
    %v518 = vunpack.c.l.b16 %v486
    %v519 = vunpack.c.l.b16 %v487
    %v520 = vunpack.c.l.b16 %v488
    %v521 = vunpack.c.l.b16 %v489
    %v522 = vunpack.c.l.b16 %v490
    %v523 = vunpack.c.l.b16 %v491
    %v524 = vunpack.c.l.b16 %v492
    %v525 = vunpack.c.l.b16 %v493
    %v526 = vunpack.c.l.b16 %v494
    %v527 = vpack.c.b16 %v512, %v511
    %v528 = vpack.c.b16 %v514, %v513
    %v529 = vpack.c.b16 %v516, %v515
    %v530 = vpack.c.b16 %v518, %v517
    %v531 = vpack.c.b16 %v520, %v519
    %v532 = vpack.c.b16 %v522, %v521
    %v533 = vpack.c.b16 %v524, %v523
    %v534 = vpack.c.b16 %v526, %v525
    %543 = vmatprep.subr.bf16.mxu0 0
    %544 = vmatpush1.bf16.msra.mxu0 %v527
    %545 = vmatprep.subr.bf16.mxu0 0
    %546 = vmatpush1.bf16.msra.mxu0 %v528
    %547 = vmatprep.subr.bf16.mxu0 0
    %548 = vmatpush1.bf16.msra.mxu0 %v529
    %549 = vmatprep.subr.bf16.mxu0 0
    %550 = vmatpush1.bf16.msra.mxu0 %v530
    %551 = vmatprep.subr.bf16.mxu0 0
    %552 = vmatpush1.bf16.msra.mxu0 %v531
    %553 = vmatprep.subr.bf16.mxu0 0
    %554 = vmatpush1.bf16.msra.mxu0 %v532
    %555 = vmatprep.subr.bf16.mxu0 0
    %556 = vmatpush1.bf16.msra.mxu0 %v533
    %557 = vmatprep.subr.bf16.mxu0 0
    %558 = vmatpush1.bf16.msra.mxu0 %v534
    %559 = vmatprep.subr.bf16.mxu0 0
    %560 = vmatpush1.bf16.msra.mxu0 0
    %561 = vmatprep.subr.bf16.mxu0 0
    %562 = vmatpush1.bf16.msra.mxu0 0
    %563 = vmatprep.subr.bf16.mxu0 0
    %564 = vmatpush1.bf16.msra.mxu0 0
    %565 = vmatprep.subr.bf16.mxu0 0
    %566 = vmatpush1.bf16.msra.mxu0 0
    %567 = vmatprep.subr.bf16.mxu0 0
    %568 = vmatpush1.bf16.msra.mxu0 0
    %569 = vmatprep.subr.bf16.mxu0 0
    %570 = vmatpush1.bf16.msra.mxu0 0
    %571 = vmatprep.subr.bf16.mxu0 0
    %572 = vmatpush1.bf16.msra.mxu0 0
    %573 = vmatprep.subr.bf16.mxu0 0
    %574 = vmatpush1.bf16.msra.mxu0 0
    %575 = vmatprep.mubr.bf16.mxu0 0
    %576 = vmatmul.mubr.bf16.gmra.mrb[0].mxu0 %v471
    %v577 = vpop.f32.mrb[0].mxu0
    %v578 = vadd.f32 0.0, %v577
    %v579 = vpop.f32.mrb[0].mxu0
    %v580 = vpop.f32.mrb[0].mxu0
    %v581 = vadd.f32 0.0, %v580
    %v582 = vpop.f32.mrb[0].mxu0
    %583 = vmatprep.mubr.bf16.mxu0 0
    %584 = vmatmul.mubr.bf16.gmra.mrb[0].mxu0 %v472
    %v585 = vpop.f32.mrb[0].mxu0
    %v586 = vadd.f32 0.0, %v585
    %v587 = vpop.f32.mrb[0].mxu0
    %v588 = vpop.f32.mrb[0].mxu0
    %v589 = vadd.f32 0.0, %v588
    %v590 = vpop.f32.mrb[0].mxu0
    %591 = vmatprep.mubr.bf16.mxu0 0
    %592 = vmatmul.mubr.bf16.gmra.mrb[0].mxu0 %v473
    %v593 = vpop.f32.mrb[0].mxu0
    %v594 = vadd.f32 0.0, %v593
    %v595 = vpop.f32.mrb[0].mxu0
    %v596 = vpop.f32.mrb[0].mxu0
    %v597 = vadd.f32 0.0, %v596
    %v598 = vpop.f32.mrb[0].mxu0
    %599 = vmatprep.mubr.bf16.mxu0 0
    %600 = vmatmul.mubr.bf16.gmra.mrb[0].mxu0 %v474
    %v601 = vpop.f32.mrb[0].mxu0
    %v602 = vadd.f32 0.0, %v601
    %v603 = vpop.f32.mrb[0].mxu0
    %v604 = vpop.f32.mrb[0].mxu0
    %v605 = vadd.f32 0.0, %v604
    %v606 = vpop.f32.mrb[0].mxu0
    %607 = vmatprep.mubr.bf16.mxu0 0
    %608 = vmatmul.mubr.bf16.gmra.mrb[0].mxu0 %v475
    %v609 = vpop.f32.mrb[0].mxu0
    %v610 = vadd.f32 0.0, %v609
    %v611 = vpop.f32.mrb[0].mxu0
    %v612 = vpop.f32.mrb[0].mxu0
    %v613 = vadd.f32 0.0, %v612
    %v614 = vpop.f32.mrb[0].mxu0
    %615 = vmatprep.mubr.bf16.mxu0 0
    %616 = vmatmul.mubr.bf16.gmra.mrb[0].mxu0 %v476
    %v617 = vpop.f32.mrb[0].mxu0
    %v618 = vadd.f32 0.0, %v617
    %v619 = vpop.f32.mrb[0].mxu0
    %v620 = vpop.f32.mrb[0].mxu0
    %v621 = vadd.f32 0.0, %v620
    %v622 = vpop.f32.mrb[0].mxu0
    %623 = vmatprep.mubr.bf16.mxu0 0
    %624 = vmatmul.mubr.bf16.gmra.mrb[0].mxu0 %v477
    %v625 = vpop.f32.mrb[0].mxu0
    %v626 = vadd.f32 0.0, %v625
    %v627 = vpop.f32.mrb[0].mxu0
    %v628 = vpop.f32.mrb[0].mxu0
    %v629 = vadd.f32 0.0, %v628
    %v630 = vpop.f32.mrb[0].mxu0
    %631 = vmatprep.mubr.bf16.mxu0 0
    %632 = vmatmul.mubr.bf16.gmra.mrb[0].mxu0 %v478
    %v633 = vpop.f32.mrb[0].mxu0
    %v634 = vadd.f32 0.0, %v633
    %v635 = vpop.f32.mrb[0].mxu0
    %v636 = vpop.f32.mrb[0].mxu0
    %v637 = vadd.f32 0.0, %v636
    %v638 = vpop.f32.mrb[0].mxu0
    %639 = vdwg.mxu0
    %v640 = vmul.f32 %v578, %v92
    %v641 = vmul.f32 %v581, %v97
    %v642 = vmul.f32 %v586, %v102
    %v643 = vmul.f32 %v589, %v107
    %v644 = vmul.f32 %v594, %v112
    %v645 = vmul.f32 %v597, %v117
    %v646 = vmul.f32 %v602, %v122
    %v647 = vmul.f32 %v605, %v127
    %v648 = vmul.f32 %v610, %v132
    %v649 = vmul.f32 %v613, %v137
    %v650 = vmul.f32 %v618, %v142
    %v651 = vmul.f32 %v621, %v147
    %v652 = vmul.f32 %v626, %v152
    %v653 = vmul.f32 %v629, %v157
    %v654 = vmul.f32 %v634, %v162
    %v655 = vmul.f32 %v637, %v167
    %v656 = vpack.c.bf16 %v641, %v640
    %v657 = vpack.c.bf16 %v643, %v642
    %v658 = vpack.c.bf16 %v645, %v644
    %v659 = vpack.c.bf16 %v647, %v646
    %v660 = vpack.c.bf16 %v649, %v648
    %v661 = vpack.c.bf16 %v651, %v650
    %v662 = vpack.c.bf16 %v653, %v652
    %v663 = vpack.c.bf16 %v655, %v654
    %664 = vmatprep.subr.bf16.mxu0 0
    %665 = vmatpush1.bf16.msra.mxu0 %v656
    %666 = vmatprep.subr.bf16.mxu0 0
    %667 = vmatpush1.bf16.msra.mxu0 %v657
    %668 = vmatprep.subr.bf16.mxu0 0
    %669 = vmatpush1.bf16.msra.mxu0 %v658
    %670 = vmatprep.subr.bf16.mxu0 0
    %671 = vmatpush1.bf16.msra.mxu0 %v659
    %672 = vmatprep.subr.bf16.mxu0 0
    %673 = vmatpush1.bf16.msra.mxu0 %v660
    %674 = vmatprep.subr.bf16.mxu0 0
    %675 = vmatpush1.bf16.msra.mxu0 %v661
    %676 = vmatprep.subr.bf16.mxu0 0
    %677 = vmatpush1.bf16.msra.mxu0 %v662
    %678 = vmatprep.subr.bf16.mxu0 0
    %679 = vmatpush1.bf16.msra.mxu0 %v663
    %680 = vmatprep.subr.bf16.mxu0 0
    %681 = vmatpush1.bf16.msra.mxu0 0
    %682 = vmatprep.subr.bf16.mxu0 0
    %683 = vmatpush1.bf16.msra.mxu0 0
    %684 = vmatprep.subr.bf16.mxu0 0
    %685 = vmatpush1.bf16.msra.mxu0 0
    %686 = vmatprep.subr.bf16.mxu0 0
    %687 = vmatpush1.bf16.msra.mxu0 0
    %688 = vmatprep.subr.bf16.mxu0 0
    %689 = vmatpush1.bf16.msra.mxu0 0
    %690 = vmatprep.subr.bf16.mxu0 0
    %691 = vmatpush1.bf16.msra.mxu0 0
    %692 = vmatprep.subr.bf16.mxu0 0
    %693 = vmatpush1.bf16.msra.mxu0 0
    %694 = vmatprep.subr.bf16.mxu0 0
    %695 = vmatpush1.bf16.msra.mxu0 0
    %696 = vmatprep.mubr.bf16.mxu0 0
    %697 = vmatmul.mubr.bf16.gmra.mrb[0].mxu0 %v225
    %v698 = vpop.f32.mrb[0].mxu0
    %v699 = vadd.f32 0.0, %v698
    %v700 = vpop.f32.mrb[0].mxu0
    %v701 = vpop.f32.mrb[0].mxu0
    %v702 = vadd.f32 0.0, %v701
    %v703 = vpop.f32.mrb[0].mxu0
    %704 = vmatprep.mubr.bf16.mxu0 0
    %705 = vmatmul.mubr.bf16.gmra.mrb[0].mxu0 %v226
    %v706 = vpop.f32.mrb[0].mxu0
    %v707 = vadd.f32 0.0, %v706
    %v708 = vpop.f32.mrb[0].mxu0
    %v709 = vpop.f32.mrb[0].mxu0
    %v710 = vadd.f32 0.0, %v709
    %v711 = vpop.f32.mrb[0].mxu0
    %712 = vmatprep.mubr.bf16.mxu0 0
    %713 = vmatmul.mubr.bf16.gmra.mrb[0].mxu0 %v227
    %v714 = vpop.f32.mrb[0].mxu0
    %v715 = vadd.f32 0.0, %v714
    %v716 = vpop.f32.mrb[0].mxu0
    %v717 = vpop.f32.mrb[0].mxu0
    %v718 = vadd.f32 0.0, %v717
    %v719 = vpop.f32.mrb[0].mxu0
    %720 = vmatprep.mubr.bf16.mxu0 0
    %721 = vmatmul.mubr.bf16.gmra.mrb[0].mxu0 %v228
    %v722 = vpop.f32.mrb[0].mxu0
    %v723 = vadd.f32 0.0, %v722
    %v724 = vpop.f32.mrb[0].mxu0
    %v725 = vpop.f32.mrb[0].mxu0
    %v726 = vadd.f32 0.0, %v725
    %v727 = vpop.f32.mrb[0].mxu0
    %728 = vmatprep.mubr.bf16.mxu0 0
    %729 = vmatmul.mubr.bf16.gmra.mrb[0].mxu0 %v229
    %v730 = vpop.f32.mrb[0].mxu0
    %v731 = vadd.f32 0.0, %v730
    %v732 = vpop.f32.mrb[0].mxu0
    %v733 = vpop.f32.mrb[0].mxu0
    %v734 = vadd.f32 0.0, %v733
    %v735 = vpop.f32.mrb[0].mxu0
    %736 = vmatprep.mubr.bf16.mxu0 0
    %737 = vmatmul.mubr.bf16.gmra.mrb[0].mxu0 %v230
    %v738 = vpop.f32.mrb[0].mxu0
    %v739 = vadd.f32 0.0, %v738
    %v740 = vpop.f32.mrb[0].mxu0
    %v741 = vpop.f32.mrb[0].mxu0
    %v742 = vadd.f32 0.0, %v741
    %v743 = vpop.f32.mrb[0].mxu0
    %744 = vmatprep.mubr.bf16.mxu0 0
    %745 = vmatmul.mubr.bf16.gmra.mrb[0].mxu0 %v231
    %v746 = vpop.f32.mrb[0].mxu0
    %v747 = vadd.f32 0.0, %v746
    %v748 = vpop.f32.mrb[0].mxu0
    %v749 = vpop.f32.mrb[0].mxu0
    %v750 = vadd.f32 0.0, %v749
    %v751 = vpop.f32.mrb[0].mxu0
    %752 = vmatprep.mubr.bf16.mxu0 0
    %753 = vmatmul.mubr.bf16.gmra.mrb[0].mxu0 %v232
    %v754 = vpop.f32.mrb[0].mxu0
    %v755 = vadd.f32 0.0, %v754
    %v756 = vpop.f32.mrb[0].mxu0
    %v757 = vpop.f32.mrb[0].mxu0
    %v758 = vadd.f32 0.0, %v757
    %v759 = vpop.f32.mrb[0].mxu0
    %760 = vdwg.mxu0
    %v761 = vmul.f32 %v699, %v341
    %v762 = vmul.f32 %v702, %v346
    %v763 = vmul.f32 %v707, %v351
    %v764 = vmul.f32 %v710, %v356
    %v765 = vmul.f32 %v715, %v361
    %v766 = vmul.f32 %v718, %v366
    %v767 = vmul.f32 %v723, %v371
    %v768 = vmul.f32 %v726, %v376
    %v769 = vmul.f32 %v731, %v381
    %v770 = vmul.f32 %v734, %v386
    %v771 = vmul.f32 %v739, %v391
    %v772 = vmul.f32 %v742, %v396
    %v773 = vmul.f32 %v747, %v401
    %v774 = vmul.f32 %v750, %v406
    %v775 = vmul.f32 %v755, %v411
    %v776 = vmul.f32 %v758, %v416
    %v777 = vld [vmem:[%s5 + $0x1] sm:$0x1]
    %v778 = vlaneseq
    %v779 = vshrl.u32 %v778, 7
    %v780 = vsub.s32 0, %v779
    %v781 = vrot.slane %v777, %v780
    %v782 = vadd.f32 %v761, %v781
    %v783 = vadd.f32 %v762, %v781
    %v784 = vadd.f32 %v763, %v781
    %v785 = vadd.f32 %v764, %v781
    %v786 = vadd.f32 %v765, %v781
    %v787 = vadd.f32 %v766, %v781
    %v788 = vadd.f32 %v767, %v781
    %v789 = vadd.f32 %v768, %v781
    %v790 = vadd.f32 %v769, %v781
    %v791 = vadd.f32 %v770, %v781
    %v792 = vadd.f32 %v771, %v781
    %v793 = vadd.f32 %v772, %v781
    %v794 = vadd.f32 %v773, %v781
    %v795 = vadd.f32 %v774, %v781
    %v796 = vadd.f32 %v775, %v781
    %v797 = vadd.f32 %v776, %v781
    %v798 = vmax.f32 %v782, 0.0
    %v799 = vmax.f32 %v783, 0.0
    %v800 = vmax.f32 %v784, 0.0
    %v801 = vmax.f32 %v785, 0.0
    %v802 = vmax.f32 %v786, 0.0
    %v803 = vmax.f32 %v787, 0.0
    %v804 = vmax.f32 %v788, 0.0
    %v805 = vmax.f32 %v789, 0.0
    %v806 = vmax.f32 %v790, 0.0
    %v807 = vmax.f32 %v791, 0.0
    %v808 = vmax.f32 %v792, 0.0
    %v809 = vmax.f32 %v793, 0.0
    %v810 = vmax.f32 %v794, 0.0
    %v811 = vmax.f32 %v795, 0.0
    %v812 = vmax.f32 %v796, 0.0
    %v813 = vmax.f32 %v797, 0.0
    %814 = vst [vmem:[#allocation2] sm:$0xff] %v798
    %815 = vst [vmem:[#allocation2 + $0x8] sm:$0xff] %v799
    %816 = vst [vmem:[#allocation2 + $0x10] sm:$0xff] %v800
    %817 = vst [vmem:[#allocation2 + $0x18] sm:$0xff] %v801
    %818 = vst [vmem:[#allocation2 + $0x20] sm:$0xff] %v802
    %819 = vst [vmem:[#allocation2 + $0x28] sm:$0xff] %v803
    %820 = vst [vmem:[#allocation2 + $0x30] sm:$0xff] %v804
    %821 = vst [vmem:[#allocation2 + $0x38] sm:$0xff] %v805
    %822 = vst [vmem:[#allocation2 + $0x40] sm:$0xff] %v806
    %823 = vst [vmem:[#allocation2 + $0x48] sm:$0xff] %v807
    %824 = vst [vmem:[#allocation2 + $0x50] sm:$0xff] %v808
    %825 = vst [vmem:[#allocation2 + $0x58] sm:$0xff] %v809
    %826 = vst [vmem:[#allocation2 + $0x60] sm:$0xff] %v810
    %827 = vst [vmem:[#allocation2 + $0x68] sm:$0xff] %v811
    %828 = vst [vmem:[#allocation2 + $0x70] sm:$0xff] %v812
    %829 = vst [vmem:[#allocation2 + $0x78] sm:$0xff] %v813
    // Predicated region
    $region26: #{tpu_custom_call.1} parent=1 // pred_check
      _
    $region27: #{tpu_custom_call.1} parent=1 // pred_check_branch
      %831 = sbr.rel (0) target = $region29
    $region28: #{tpu_custom_call.1} parent=1 // pred_region
      %s833 = ssub.s32 2048, 2048
      %834 = vsyncadd [#allocation3], %s833
      %s835 = sshll.u32 [#allocation2], 4
      %s836 = int_to_ptr.vmem [resolvable:$true] %s835
      %841 = dma.vmem_to_hbm [thread:$0]  %s836, 2048, %s6, [#allocation3], 128, 128, 8
    $region29: #{tpu_custom_call.1} parent=1 // pred_fallthru
      _
    // Predicated region
    $region30: #{tpu_custom_call.1} parent=1 // pred_check
      _
    $region31: #{tpu_custom_call.1} parent=1 // pred_check_branch
      %843 = sbr.rel (0) target = $region33
    $region32: #{tpu_custom_call.1} parent=1 // pred_region
      %844 = dma.done [#allocation3], 2048
    $region33: #{tpu_custom_call.1} parent=1 // pred_fallthru
      _
    %845 = vsyncpa [#allocation3], 1

</llo_original>
